<compile_context>
chip_gen: v5e
topology: v5e:2x2
jax: 0.10.0
libtpu: 0.0.40
codegen_flags: <defaults>
</compile_context>

<pallas_src>
import jax
import jax.numpy as jnp
from jax.experimental import pallas as pl
from jax.experimental.pallas import tpu as pltpu

NUM_FEATURES = 8    # model input dim (C)
OUTPUT_DIM = 4      # model output dim
HIDDEN = 32
BN_EPS = 1e-5


def _round_up(v, m):
    return (v + m - 1) // m * m


def tdnn_forward(x, x_lens, params, *, matmul_dtype=jnp.bfloat16):
    """x: (N, T, C) f32, x_lens: (N,) i32.  Returns (logits (N, T-26, D), x_lens-26)."""
    n, t, c = x.shape
    hidden = params["w1"].shape[2]
    out_dim = params["wo"].shape[1]
    f32 = jnp.float32

    # Frames that survive each VALID conv stage.
    t1, t2, t3 = t - 2, t - 10, t - 26

    # Global-slab geometry: batch stacked along rows with stride t.  All row counts are
    # multiples of 8 so every in-kernel row slice is sublane aligned; rows straddling an
    # utterance boundary / tail padding carry garbage and are masked out of the BN
    # statistics and sliced away in the wrapper.
    r3 = _round_up(n * t, 8)            # rows of the layer-3 / output slab
    r2 = r3 + 16                        # + layer-3 max tap shift (4 taps * dilation 4)
    r1 = r2 + 8                         # + layer-2 max tap shift (4 taps * dilation 2)
    out_pad = _round_up(out_dim, 128)   # lane-dense output -> unmasked vector stores

    # ------------- wrapper-side layout plumbing (cheap XLA ops, fuse w/ caller) -------
    # Layer-1 im2col: one K = 3*C matmul in the kernel, no odd row shifts in-kernel.
    xf = x.astype(f32).reshape(n * t, c)
    x_pad = jnp.zeros((r1 + 2, c), f32).at[: n * t].set(xf)
    x_im2col = jnp.concatenate(
        [x_pad[0:r1], x_pad[1:r1 + 1], x_pad[2:r1 + 2]], axis=1
    ).astype(matmul_dtype)                                             # (r1, 3C)

    # Weights pre-cast to the MXU dtype (bf16 path: half the DMA bytes, no in-kernel
    # weight casts).  w2/w3 packed into one array: taps 0..4 = conv2, 5..9 = conv3.
    w1_flat = params["w1"].reshape(3 * c, hidden).astype(matmul_dtype)  # (3C, H)
    w23 = jnp.concatenate([params["w2"], params["w3"]], axis=0).astype(matmul_dtype)
    wo_p = (jnp.zeros((hidden, out_pad), f32)
            .at[:, :out_dim].set(params["wo"]).astype(matmul_dtype))    # (H, 128)
    bo_p = jnp.zeros((1, out_pad), f32).at[:, :out_dim].set(params["bo"])

    # One packed f32 constants array: conv biases at rows 0/8/16 and the three BN
    # valid-row masks (broadcast across the H lanes) at 8-aligned row offsets.
    rows = jnp.arange(r1)

    def valid_mask(n_rows, t_valid):
        m = ((rows[:n_rows] % t) < t_valid) & (rows[:n_rows] < n * t)
        return jnp.broadcast_to(m.astype(f32)[:, None], (n_rows, hidden))

    m_off = (24, 24 + r1, 24 + 2 * r1)
    consts = jnp.zeros((24 + 3 * r1, hidden), f32)
    consts = consts.at[0:1].set(params["b1"])
    consts = consts.at[8:9].set(params["b2"])
    consts = consts.at[16:17].set(params["b3"])
    consts = consts.at[m_off[0]:m_off[0] + r1].set(valid_mask(r1, t1))
    consts = consts.at[m_off[1]:m_off[1] + r2].set(valid_mask(r2, t2))
    consts = consts.at[m_off[2]:m_off[2] + r3].set(valid_mask(r3, t3))

    # --------------------------------- the kernel -------------------------------------
    def kernel(x_ref, w1_ref, w23_ref, wo_ref, bo_ref, c_ref, out_ref):
        cst = c_ref[...]                                   # (24 + 3*r1, H) f32
        b1 = cst[0:1, :]
        b2 = cst[8:9, :]
        b3 = cst[16:17, :]
        m1 = cst[m_off[0]:m_off[0] + r1, :]
        m2 = cst[m_off[1]:m_off[1] + r2, :]
        m3 = cst[m_off[2]:m_off[2] + r3, :]

        def bn_stats(y, m, count):
            # Single-pass masked BatchNorm stats, all in f32 (biased variance, eps 1e-5).
            ym = y * m
            mean = jnp.sum(ym, axis=0, keepdims=True) * (1.0 / count)
            ex2 = jnp.sum(ym * y, axis=0, keepdims=True) * (1.0 / count)
            inv = jax.lax.rsqrt(ex2 - mean * mean + BN_EPS)
            return mean, inv

        w23v = w23_ref[...]                                # (10, H, H), matmul dtype

        def tap_sum_f32(k0):
            s = w23v[k0].astype(f32)
            for k in range(k0 + 1, k0 + 5):
                s = s + w23v[k].astype(f32)
            return s

        def fold_bias(b, ms, w_f32):
            # (mean*inv) @ W with the M dim padded to a full sublane tile (rows equal).
            corr = jnp.dot(jnp.broadcast_to(ms, (8, hidden)), w_f32,
                           preferred_element_type=f32)
            return b - corr[0:1, :]

        def conv_relu(ys, k0, dilation, rows_out, b_eff):
            # ys: (rows_in, H) matmul-dtype slab.  Tap shifts are even, so bf16 sublane
            # packing stays aligned; slices act on the half-width bf16 operand.
            acc = jnp.zeros((rows_out, hidden), f32)
            for j in range(5):
                s = j * dilation
                acc = acc + jnp.dot(ys[s:s + rows_out, :], w23v[k0 + j],
                                    preferred_element_type=f32)
            return jnp.maximum(acc + b_eff, 0.0)

        # Layer 1 (kernel_size=3, dilation=1): im2col'd input -> one matmul.
        y = jnp.dot(x_ref[...], w1_ref[...], preferred_element_type=f32)
        y = jnp.maximum(y + b1, 0.0)                       # (r1, H) f32
        mean, inv = bn_stats(y, m1, n * t1)

        # Layer 2 (kernel_size=5, dilation=2), BN1 folded into scale + bias correction.
        b_eff = fold_bias(b2, mean * inv, tap_sum_f32(0))
        y = conv_relu((y * inv).astype(matmul_dtype), 0, 2, r2, b_eff)
        mean, inv = bn_stats(y, m2, n * t2)

        # Layer 3 (kernel_size=5, dilation=4), BN2 folded.
        b_eff = fold_bias(b3, mean * inv, tap_sum_f32(5))
        y = conv_relu((y * inv).astype(matmul_dtype), 5, 4, r3, b_eff)
        mean, inv = bn_stats(y, m3, n * t3)

        # Output linear, BN3 folded: one lane-dense matmul + unmasked (r3, 128) store.
        wo = wo_ref[...]
        bo_eff = fold_bias(bo_ref[...], mean * inv, wo.astype(f32))
        out_ref[...] = (jnp.dot((y * inv).astype(matmul_dtype), wo,
                                preferred_element_type=f32) + bo_eff)

    vmem = pl.BlockSpec(memory_space=pltpu.MemorySpace.VMEM)
    out_flat = pl.pallas_call(
        kernel,
        out_shape=jax.ShapeDtypeStruct((r3, out_pad), f32),
        in_specs=[vmem] * 6,
        out_specs=vmem,
    )(x_im2col, w1_flat, w23, wo_p, bo_p, consts)

    # Glue (plain JAX): extract valid rows / lanes and the length arithmetic.
    logits = out_flat[: n * t].reshape(n, t, out_pad)[:, :t3, :out_dim]
    return logits, x_lens - 26


def init_params(key, num_features=NUM_FEATURES, output_dim=OUTPUT_DIM):
    ks = jax.random.split(key, 8)

    def u(k, shape, fan_in):
        bound = 1.0 / jnp.sqrt(float(fan_in))
        return jax.random.uniform(k, shape, jnp.float32, -bound, bound)

    return dict(
        # Conv weights stored as (K, Cin, Cout); torch stores (Cout, Cin, K).
        w1=u(ks[0], (3, num_features, HIDDEN), num_features * 3),
        b1=u(ks[1], (1, HIDDEN), num_features * 3),
        w2=u(ks[2], (5, HIDDEN, HIDDEN), HIDDEN * 5),
        b2=u(ks[3], (1, HIDDEN), HIDDEN * 5),
        w3=u(ks[4], (5, HIDDEN, HIDDEN), HIDDEN * 5),
        b3=u(ks[5], (1, HIDDEN), HIDDEN * 5),
        # Linear stored as (in, out); torch stores (out, in).
        wo=u(ks[6], (HIDDEN, output_dim), HIDDEN),
        bo=u(ks[7], (1, output_dim), HIDDEN),
    )


def ref_forward(x, x_lens, params):
    """Pure-JAX f32 reference (lax.conv_general_dilated) mirroring the PyTorch module."""
    xc = jnp.transpose(x, (0, 2, 1))  # (N, C, T)

    def conv(h, w_kio, b, dil):
        w_oik = jnp.transpose(w_kio, (2, 1, 0))  # (Cout, Cin, K)
        y = jax.lax.conv_general_dilated(
            h, w_oik, window_strides=(1,), padding="VALID",
            rhs_dilation=(dil,), dimension_numbers=("NCH", "OIH", "NCH"))
        return y + b.reshape(1, -1, 1)

    def bn(y):
        m = jnp.mean(y, axis=(0, 2), keepdims=True)
        v = jnp.mean((y - m) ** 2, axis=(0, 2), keepdims=True)
        return (y - m) / jnp.sqrt(v + BN_EPS)

    h = bn(jax.nn.relu(conv(xc, params["w1"], params["b1"][0], 1)))
    h = bn(jax.nn.relu(conv(h, params["w2"], params["b2"][0], 2)))
    h = bn(jax.nn.relu(conv(h, params["w3"], params["b3"][0], 4)))
    h = jnp.transpose(h, (0, 2, 1))
    logits = h @ params["wo"] + params["bo"][0]
    return logits, x_lens - 26


if __name__ == "__main__":
    key = jax.random.PRNGKey(0)
    k_x, k_p = jax.random.split(key)

    N, T = 2, 40
    x = jax.random.normal(k_x, (N, T, NUM_FEATURES), jnp.float32)
    x_lens = jnp.array([40, 33], dtype=jnp.int32)
    params = init_params(k_p)

    fwd = jax.jit(tdnn_forward, static_argnames=("matmul_dtype",))

    ref_logits, ref_lens = ref_forward(x, x_lens, params)

    # 1) Same kernel with f32 matmuls: pins the slab / im2col / BN-fold algebra.
    f32_logits, f32_lens = fwd(x, x_lens, params, matmul_dtype=jnp.float32)
    f32_logits = jax.block_until_ready(f32_logits)
    assert f32_logits.shape == (N, T - 26, OUTPUT_DIM), f32_logits.shape
    assert jnp.allclose(f32_logits, ref_logits, rtol=1e-3, atol=1e-3), (
        float(jnp.max(jnp.abs(f32_logits - ref_logits))))
    assert jnp.array_equal(f32_lens, ref_lens)

    # 2) Production path: bf16 MXU operands, f32 accumulation / BN.  Tolerance covers
    #    ~a dozen bf16 roundings of unit-scale activations along the 3-layer path.
    logits, out_lens = fwd(x, x_lens, params)
    logits = jax.block_until_ready(logits)
    out_lens = jax.block_until_ready(out_lens)
    assert logits.shape == (N, T - 26, OUTPUT_DIM), logits.shape
    assert jnp.allclose(logits, ref_logits, rtol=3e-2, atol=3e-2), (
        float(jnp.max(jnp.abs(logits - ref_logits))))
    assert jnp.array_equal(out_lens, ref_lens)

    print("KERNEL_OK")
</pallas_src>

<mosaic_0001>
module attributes {stable_mosaic.version = 11 : i64} {
  func.func @kernel(%arg0: memref<104x24xf32, #tpu.memory_space<vmem>>, %arg1: memref<24x32xf32, #tpu.memory_space<vmem>>, %arg2: memref<10x32x32xf32, #tpu.memory_space<vmem>>, %arg3: memref<32x128xf32, #tpu.memory_space<vmem>>, %arg4: memref<1x128xf32, #tpu.memory_space<vmem>>, %arg5: memref<336x32xf32, #tpu.memory_space<vmem>>, %arg6: memref<80x128xf32, #tpu.memory_space<vmem>>) attributes {dimension_semantics = [], scalar_prefetch = 0 : i64, scratch_operands = 0 : i64, tpu.core_type = #tpu.core_type<tc>} {
    %c0 = arith.constant 0 : index
    %c0_0 = arith.constant 0 : index
    %0 = vector.load %arg5[%c0, %c0_0] : memref<336x32xf32, #tpu.memory_space<vmem>>, vector<336x32xf32>
    %1 = vector.extract_strided_slice %0 {offsets = [0, 0], sizes = [1, 32], strides = [1, 1]} : vector<336x32xf32> to vector<1x32xf32>
    %2 = vector.extract_strided_slice %0 {offsets = [8, 0], sizes = [1, 32], strides = [1, 1]} : vector<336x32xf32> to vector<1x32xf32>
    %3 = vector.extract_strided_slice %0 {offsets = [16, 0], sizes = [1, 32], strides = [1, 1]} : vector<336x32xf32> to vector<1x32xf32>
    %4 = vector.extract_strided_slice %0 {offsets = [24, 0], sizes = [104, 32], strides = [1, 1]} : vector<336x32xf32> to vector<104x32xf32>
    %5 = vector.extract_strided_slice %0 {offsets = [128, 0], sizes = [96, 32], strides = [1, 1]} : vector<336x32xf32> to vector<96x32xf32>
    %6 = vector.extract_strided_slice %0 {offsets = [232, 0], sizes = [80, 32], strides = [1, 1]} : vector<336x32xf32> to vector<80x32xf32>
    %c0_1 = arith.constant 0 : index
    %c0_2 = arith.constant 0 : index
    %c0_3 = arith.constant 0 : index
    %7 = vector.load %arg2[%c0_1, %c0_2, %c0_3] : memref<10x32x32xf32, #tpu.memory_space<vmem>>, vector<10x32x32xf32>
    %c0_4 = arith.constant 0 : index
    %c0_5 = arith.constant 0 : index
    %8 = vector.load %arg0[%c0_4, %c0_5] : memref<104x24xf32, #tpu.memory_space<vmem>>, vector<104x24xf32>
    %c0_6 = arith.constant 0 : index
    %c0_7 = arith.constant 0 : index
    %9 = vector.load %arg1[%c0_6, %c0_7] : memref<24x32xf32, #tpu.memory_space<vmem>>, vector<24x32xf32>
    %cst = arith.constant dense<0.000000e+00> : vector<104x32xf32>
    %10 = tpu.matmul %8, %9, %cst {dimension_numbers = #tpu.dot_dimension_numbers<[1], [0], [0], [1], [0, 0, 1, 1], [], []>} : vector<104x24xf32>, vector<24x32xf32>, vector<104x32xf32> -> vector<104x32xf32>
    %11 = vector.broadcast %1 : vector<1x32xf32> to vector<104x32xf32>
    %12 = arith.addf %10, %11 : vector<104x32xf32>
    %cst_8 = arith.constant 0.000000e+00 : f32
    %13 = vector.broadcast %cst_8 : f32 to vector<104x32xf32>
    %14 = arith.maximumf %12, %13 : vector<104x32xf32>
    %15 = arith.mulf %14, %4 : vector<104x32xf32>
    %cst_9 = arith.constant dense<0.000000e+00> : vector<32xf32>
    %16 = vector.multi_reduction <add>, %15, %cst_9 [0] : vector<104x32xf32> to vector<32xf32>
    %17 = vector.shape_cast %16 : vector<32xf32> to vector<1x32xf32>
    %cst_10 = arith.constant 0.0131578948 : f32
    %18 = vector.broadcast %cst_10 : f32 to vector<1x32xf32>
    %19 = arith.mulf %17, %18 : vector<1x32xf32>
    %20 = arith.mulf %15, %14 : vector<104x32xf32>
    %cst_11 = arith.constant dense<0.000000e+00> : vector<32xf32>
    %21 = vector.multi_reduction <add>, %20, %cst_11 [0] : vector<104x32xf32> to vector<32xf32>
    %22 = vector.shape_cast %21 : vector<32xf32> to vector<1x32xf32>
    %cst_12 = arith.constant 0.0131578948 : f32
    %23 = vector.broadcast %cst_12 : f32 to vector<1x32xf32>
    %24 = arith.mulf %22, %23 : vector<1x32xf32>
    %25 = arith.mulf %19, %19 : vector<1x32xf32>
    %26 = arith.subf %24, %25 : vector<1x32xf32>
    %cst_13 = arith.constant 9.99999974E-6 : f32
    %27 = vector.broadcast %cst_13 : f32 to vector<1x32xf32>
    %28 = arith.addf %26, %27 : vector<1x32xf32>
    %29 = math.rsqrt %28 : vector<1x32xf32>
    %30 = arith.mulf %19, %29 : vector<1x32xf32>
    %31 = vector.extract_strided_slice %7 {offsets = [0, 0, 0], sizes = [1, 32, 32], strides = [1, 1, 1]} : vector<10x32x32xf32> to vector<1x32x32xf32>
    %32 = vector.shape_cast %31 : vector<1x32x32xf32> to vector<32x32xf32>
    %33 = vector.extract_strided_slice %7 {offsets = [1, 0, 0], sizes = [1, 32, 32], strides = [1, 1, 1]} : vector<10x32x32xf32> to vector<1x32x32xf32>
    %34 = vector.shape_cast %33 : vector<1x32x32xf32> to vector<32x32xf32>
    %35 = arith.addf %32, %34 : vector<32x32xf32>
    %36 = vector.extract_strided_slice %7 {offsets = [2, 0, 0], sizes = [1, 32, 32], strides = [1, 1, 1]} : vector<10x32x32xf32> to vector<1x32x32xf32>
    %37 = vector.shape_cast %36 : vector<1x32x32xf32> to vector<32x32xf32>
    %38 = arith.addf %35, %37 : vector<32x32xf32>
    %39 = vector.extract_strided_slice %7 {offsets = [3, 0, 0], sizes = [1, 32, 32], strides = [1, 1, 1]} : vector<10x32x32xf32> to vector<1x32x32xf32>
    %40 = vector.shape_cast %39 : vector<1x32x32xf32> to vector<32x32xf32>
    %41 = arith.addf %38, %40 : vector<32x32xf32>
    %42 = vector.extract_strided_slice %7 {offsets = [4, 0, 0], sizes = [1, 32, 32], strides = [1, 1, 1]} : vector<10x32x32xf32> to vector<1x32x32xf32>
    %43 = vector.shape_cast %42 : vector<1x32x32xf32> to vector<32x32xf32>
    %44 = arith.addf %41, %43 : vector<32x32xf32>
    %45 = vector.shape_cast %30 : vector<1x32xf32> to vector<1x32xf32>
    %46 = vector.broadcast %45 : vector<1x32xf32> to vector<8x32xf32>
    %cst_14 = arith.constant dense<0.000000e+00> : vector<8x32xf32>
    %47 = tpu.matmul %46, %44, %cst_14 {dimension_numbers = #tpu.dot_dimension_numbers<[1], [0], [0], [1], [0, 0, 1, 1], [], []>} : vector<8x32xf32>, vector<32x32xf32>, vector<8x32xf32> -> vector<8x32xf32>
    %48 = vector.extract_strided_slice %47 {offsets = [0, 0], sizes = [1, 32], strides = [1, 1]} : vector<8x32xf32> to vector<1x32xf32>
    %49 = arith.subf %2, %48 : vector<1x32xf32>
    %50 = vector.broadcast %29 : vector<1x32xf32> to vector<104x32xf32>
    %51 = arith.mulf %14, %50 : vector<104x32xf32>
    %cst_15 = arith.constant 0.000000e+00 : f32
    %52 = vector.broadcast %cst_15 : f32 to vector<96x32xf32>
    %53 = vector.extract_strided_slice %51 {offsets = [0, 0], sizes = [96, 32], strides = [1, 1]} : vector<104x32xf32> to vector<96x32xf32>
    %54 = vector.extract_strided_slice %7 {offsets = [0, 0, 0], sizes = [1, 32, 32], strides = [1, 1, 1]} : vector<10x32x32xf32> to vector<1x32x32xf32>
    %55 = vector.shape_cast %54 : vector<1x32x32xf32> to vector<32x32xf32>
    %cst_16 = arith.constant dense<0.000000e+00> : vector<96x32xf32>
    %56 = tpu.matmul %53, %55, %cst_16 {dimension_numbers = #tpu.dot_dimension_numbers<[1], [0], [0], [1], [0, 0, 1, 1], [], []>} : vector<96x32xf32>, vector<32x32xf32>, vector<96x32xf32> -> vector<96x32xf32>
    %57 = arith.addf %52, %56 : vector<96x32xf32>
    %58 = vector.extract_strided_slice %51 {offsets = [2, 0], sizes = [96, 32], strides = [1, 1]} : vector<104x32xf32> to vector<96x32xf32>
    %59 = vector.extract_strided_slice %7 {offsets = [1, 0, 0], sizes = [1, 32, 32], strides = [1, 1, 1]} : vector<10x32x32xf32> to vector<1x32x32xf32>
    %60 = vector.shape_cast %59 : vector<1x32x32xf32> to vector<32x32xf32>
    %cst_17 = arith.constant dense<0.000000e+00> : vector<96x32xf32>
    %61 = tpu.matmul %58, %60, %cst_17 {dimension_numbers = #tpu.dot_dimension_numbers<[1], [0], [0], [1], [0, 0, 1, 1], [], []>} : vector<96x32xf32>, vector<32x32xf32>, vector<96x32xf32> -> vector<96x32xf32>
    %62 = arith.addf %57, %61 : vector<96x32xf32>
    %63 = vector.extract_strided_slice %51 {offsets = [4, 0], sizes = [96, 32], strides = [1, 1]} : vector<104x32xf32> to vector<96x32xf32>
    %64 = vector.extract_strided_slice %7 {offsets = [2, 0, 0], sizes = [1, 32, 32], strides = [1, 1, 1]} : vector<10x32x32xf32> to vector<1x32x32xf32>
    %65 = vector.shape_cast %64 : vector<1x32x32xf32> to vector<32x32xf32>
    %cst_18 = arith.constant dense<0.000000e+00> : vector<96x32xf32>
    %66 = tpu.matmul %63, %65, %cst_18 {dimension_numbers = #tpu.dot_dimension_numbers<[1], [0], [0], [1], [0, 0, 1, 1], [], []>} : vector<96x32xf32>, vector<32x32xf32>, vector<96x32xf32> -> vector<96x32xf32>
    %67 = arith.addf %62, %66 : vector<96x32xf32>
    %68 = vector.extract_strided_slice %51 {offsets = [6, 0], sizes = [96, 32], strides = [1, 1]} : vector<104x32xf32> to vector<96x32xf32>
    %69 = vector.extract_strided_slice %7 {offsets = [3, 0, 0], sizes = [1, 32, 32], strides = [1, 1, 1]} : vector<10x32x32xf32> to vector<1x32x32xf32>
    %70 = vector.shape_cast %69 : vector<1x32x32xf32> to vector<32x32xf32>
    %cst_19 = arith.constant dense<0.000000e+00> : vector<96x32xf32>
    %71 = tpu.matmul %68, %70, %cst_19 {dimension_numbers = #tpu.dot_dimension_numbers<[1], [0], [0], [1], [0, 0, 1, 1], [], []>} : vector<96x32xf32>, vector<32x32xf32>, vector<96x32xf32> -> vector<96x32xf32>
    %72 = arith.addf %67, %71 : vector<96x32xf32>
    %73 = vector.extract_strided_slice %51 {offsets = [8, 0], sizes = [96, 32], strides = [1, 1]} : vector<104x32xf32> to vector<96x32xf32>
    %74 = vector.extract_strided_slice %7 {offsets = [4, 0, 0], sizes = [1, 32, 32], strides = [1, 1, 1]} : vector<10x32x32xf32> to vector<1x32x32xf32>
    %75 = vector.shape_cast %74 : vector<1x32x32xf32> to vector<32x32xf32>
    %cst_20 = arith.constant dense<0.000000e+00> : vector<96x32xf32>
    %76 = tpu.matmul %73, %75, %cst_20 {dimension_numbers = #tpu.dot_dimension_numbers<[1], [0], [0], [1], [0, 0, 1, 1], [], []>} : vector<96x32xf32>, vector<32x32xf32>, vector<96x32xf32> -> vector<96x32xf32>
    %77 = arith.addf %72, %76 : vector<96x32xf32>
    %78 = vector.broadcast %49 : vector<1x32xf32> to vector<96x32xf32>
    %79 = arith.addf %77, %78 : vector<96x32xf32>
    %cst_21 = arith.constant 0.000000e+00 : f32
    %80 = vector.broadcast %cst_21 : f32 to vector<96x32xf32>
    %81 = arith.maximumf %79, %80 : vector<96x32xf32>
    %82 = arith.mulf %81, %5 : vector<96x32xf32>
    %cst_22 = arith.constant dense<0.000000e+00> : vector<32xf32>
    %83 = vector.multi_reduction <add>, %82, %cst_22 [0] : vector<96x32xf32> to vector<32xf32>
    %84 = vector.shape_cast %83 : vector<32xf32> to vector<1x32xf32>
    %cst_23 = arith.constant 0.0166666675 : f32
    %85 = vector.broadcast %cst_23 : f32 to vector<1x32xf32>
    %86 = arith.mulf %84, %85 : vector<1x32xf32>
    %87 = arith.mulf %82, %81 : vector<96x32xf32>
    %cst_24 = arith.constant dense<0.000000e+00> : vector<32xf32>
    %88 = vector.multi_reduction <add>, %87, %cst_24 [0] : vector<96x32xf32> to vector<32xf32>
    %89 = vector.shape_cast %88 : vector<32xf32> to vector<1x32xf32>
    %cst_25 = arith.constant 0.0166666675 : f32
    %90 = vector.broadcast %cst_25 : f32 to vector<1x32xf32>
    %91 = arith.mulf %89, %90 : vector<1x32xf32>
    %92 = arith.mulf %86, %86 : vector<1x32xf32>
    %93 = arith.subf %91, %92 : vector<1x32xf32>
    %cst_26 = arith.constant 9.99999974E-6 : f32
    %94 = vector.broadcast %cst_26 : f32 to vector<1x32xf32>
    %95 = arith.addf %93, %94 : vector<1x32xf32>
    %96 = math.rsqrt %95 : vector<1x32xf32>
    %97 = arith.mulf %86, %96 : vector<1x32xf32>
    %98 = vector.extract_strided_slice %7 {offsets = [5, 0, 0], sizes = [1, 32, 32], strides = [1, 1, 1]} : vector<10x32x32xf32> to vector<1x32x32xf32>
    %99 = vector.shape_cast %98 : vector<1x32x32xf32> to vector<32x32xf32>
    %100 = vector.extract_strided_slice %7 {offsets = [6, 0, 0], sizes = [1, 32, 32], strides = [1, 1, 1]} : vector<10x32x32xf32> to vector<1x32x32xf32>
    %101 = vector.shape_cast %100 : vector<1x32x32xf32> to vector<32x32xf32>
    %102 = arith.addf %99, %101 : vector<32x32xf32>
    %103 = vector.extract_strided_slice %7 {offsets = [7, 0, 0], sizes = [1, 32, 32], strides = [1, 1, 1]} : vector<10x32x32xf32> to vector<1x32x32xf32>
    %104 = vector.shape_cast %103 : vector<1x32x32xf32> to vector<32x32xf32>
    %105 = arith.addf %102, %104 : vector<32x32xf32>
    %106 = vector.extract_strided_slice %7 {offsets = [8, 0, 0], sizes = [1, 32, 32], strides = [1, 1, 1]} : vector<10x32x32xf32> to vector<1x32x32xf32>
    %107 = vector.shape_cast %106 : vector<1x32x32xf32> to vector<32x32xf32>
    %108 = arith.addf %105, %107 : vector<32x32xf32>
    %109 = vector.extract_strided_slice %7 {offsets = [9, 0, 0], sizes = [1, 32, 32], strides = [1, 1, 1]} : vector<10x32x32xf32> to vector<1x32x32xf32>
    %110 = vector.shape_cast %109 : vector<1x32x32xf32> to vector<32x32xf32>
    %111 = arith.addf %108, %110 : vector<32x32xf32>
    %112 = vector.shape_cast %97 : vector<1x32xf32> to vector<1x32xf32>
    %113 = vector.broadcast %112 : vector<1x32xf32> to vector<8x32xf32>
    %cst_27 = arith.constant dense<0.000000e+00> : vector<8x32xf32>
    %114 = tpu.matmul %113, %111, %cst_27 {dimension_numbers = #tpu.dot_dimension_numbers<[1], [0], [0], [1], [0, 0, 1, 1], [], []>} : vector<8x32xf32>, vector<32x32xf32>, vector<8x32xf32> -> vector<8x32xf32>
    %115 = vector.extract_strided_slice %114 {offsets = [0, 0], sizes = [1, 32], strides = [1, 1]} : vector<8x32xf32> to vector<1x32xf32>
    %116 = arith.subf %3, %115 : vector<1x32xf32>
    %117 = vector.broadcast %96 : vector<1x32xf32> to vector<96x32xf32>
    %118 = arith.mulf %81, %117 : vector<96x32xf32>
    %cst_28 = arith.constant 0.000000e+00 : f32
    %119 = vector.broadcast %cst_28 : f32 to vector<80x32xf32>
    %120 = vector.extract_strided_slice %118 {offsets = [0, 0], sizes = [80, 32], strides = [1, 1]} : vector<96x32xf32> to vector<80x32xf32>
    %121 = vector.extract_strided_slice %7 {offsets = [5, 0, 0], sizes = [1, 32, 32], strides = [1, 1, 1]} : vector<10x32x32xf32> to vector<1x32x32xf32>
    %122 = vector.shape_cast %121 : vector<1x32x32xf32> to vector<32x32xf32>
    %cst_29 = arith.constant dense<0.000000e+00> : vector<80x32xf32>
    %123 = tpu.matmul %120, %122, %cst_29 {dimension_numbers = #tpu.dot_dimension_numbers<[1], [0], [0], [1], [0, 0, 1, 1], [], []>} : vector<80x32xf32>, vector<32x32xf32>, vector<80x32xf32> -> vector<80x32xf32>
    %124 = arith.addf %119, %123 : vector<80x32xf32>
    %125 = vector.extract_strided_slice %118 {offsets = [4, 0], sizes = [80, 32], strides = [1, 1]} : vector<96x32xf32> to vector<80x32xf32>
    %126 = vector.extract_strided_slice %7 {offsets = [6, 0, 0], sizes = [1, 32, 32], strides = [1, 1, 1]} : vector<10x32x32xf32> to vector<1x32x32xf32>
    %127 = vector.shape_cast %126 : vector<1x32x32xf32> to vector<32x32xf32>
    %cst_30 = arith.constant dense<0.000000e+00> : vector<80x32xf32>
    %128 = tpu.matmul %125, %127, %cst_30 {dimension_numbers = #tpu.dot_dimension_numbers<[1], [0], [0], [1], [0, 0, 1, 1], [], []>} : vector<80x32xf32>, vector<32x32xf32>, vector<80x32xf32> -> vector<80x32xf32>
    %129 = arith.addf %124, %128 : vector<80x32xf32>
    %130 = vector.extract_strided_slice %118 {offsets = [8, 0], sizes = [80, 32], strides = [1, 1]} : vector<96x32xf32> to vector<80x32xf32>
    %131 = vector.extract_strided_slice %7 {offsets = [7, 0, 0], sizes = [1, 32, 32], strides = [1, 1, 1]} : vector<10x32x32xf32> to vector<1x32x32xf32>
    %132 = vector.shape_cast %131 : vector<1x32x32xf32> to vector<32x32xf32>
    %cst_31 = arith.constant dense<0.000000e+00> : vector<80x32xf32>
    %133 = tpu.matmul %130, %132, %cst_31 {dimension_numbers = #tpu.dot_dimension_numbers<[1], [0], [0], [1], [0, 0, 1, 1], [], []>} : vector<80x32xf32>, vector<32x32xf32>, vector<80x32xf32> -> vector<80x32xf32>
    %134 = arith.addf %129, %133 : vector<80x32xf32>
    %135 = vector.extract_strided_slice %118 {offsets = [12, 0], sizes = [80, 32], strides = [1, 1]} : vector<96x32xf32> to vector<80x32xf32>
    %136 = vector.extract_strided_slice %7 {offsets = [8, 0, 0], sizes = [1, 32, 32], strides = [1, 1, 1]} : vector<10x32x32xf32> to vector<1x32x32xf32>
    %137 = vector.shape_cast %136 : vector<1x32x32xf32> to vector<32x32xf32>
    %cst_32 = arith.constant dense<0.000000e+00> : vector<80x32xf32>
    %138 = tpu.matmul %135, %137, %cst_32 {dimension_numbers = #tpu.dot_dimension_numbers<[1], [0], [0], [1], [0, 0, 1, 1], [], []>} : vector<80x32xf32>, vector<32x32xf32>, vector<80x32xf32> -> vector<80x32xf32>
    %139 = arith.addf %134, %138 : vector<80x32xf32>
    %140 = vector.extract_strided_slice %118 {offsets = [16, 0], sizes = [80, 32], strides = [1, 1]} : vector<96x32xf32> to vector<80x32xf32>
    %141 = vector.extract_strided_slice %7 {offsets = [9, 0, 0], sizes = [1, 32, 32], strides = [1, 1, 1]} : vector<10x32x32xf32> to vector<1x32x32xf32>
    %142 = vector.shape_cast %141 : vector<1x32x32xf32> to vector<32x32xf32>
    %cst_33 = arith.constant dense<0.000000e+00> : vector<80x32xf32>
    %143 = tpu.matmul %140, %142, %cst_33 {dimension_numbers = #tpu.dot_dimension_numbers<[1], [0], [0], [1], [0, 0, 1, 1], [], []>} : vector<80x32xf32>, vector<32x32xf32>, vector<80x32xf32> -> vector<80x32xf32>
    %144 = arith.addf %139, %143 : vector<80x32xf32>
    %145 = vector.broadcast %116 : vector<1x32xf32> to vector<80x32xf32>
    %146 = arith.addf %144, %145 : vector<80x32xf32>
    %cst_34 = arith.constant 0.000000e+00 : f32
    %147 = vector.broadcast %cst_34 : f32 to vector<80x32xf32>
    %148 = arith.maximumf %146, %147 : vector<80x32xf32>
    %149 = arith.mulf %148, %6 : vector<80x32xf32>
    %cst_35 = arith.constant dense<0.000000e+00> : vector<32xf32>
    %150 = vector.multi_reduction <add>, %149, %cst_35 [0] : vector<80x32xf32> to vector<32xf32>
    %151 = vector.shape_cast %150 : vector<32xf32> to vector<1x32xf32>
    %cst_36 = arith.constant 0.0357142873 : f32
    %152 = vector.broadcast %cst_36 : f32 to vector<1x32xf32>
    %153 = arith.mulf %151, %152 : vector<1x32xf32>
    %154 = arith.mulf %149, %148 : vector<80x32xf32>
    %cst_37 = arith.constant dense<0.000000e+00> : vector<32xf32>
    %155 = vector.multi_reduction <add>, %154, %cst_37 [0] : vector<80x32xf32> to vector<32xf32>
    %156 = vector.shape_cast %155 : vector<32xf32> to vector<1x32xf32>
    %cst_38 = arith.constant 0.0357142873 : f32
    %157 = vector.broadcast %cst_38 : f32 to vector<1x32xf32>
    %158 = arith.mulf %156, %157 : vector<1x32xf32>
    %159 = arith.mulf %153, %153 : vector<1x32xf32>
    %160 = arith.subf %158, %159 : vector<1x32xf32>
    %cst_39 = arith.constant 9.99999974E-6 : f32
    %161 = vector.broadcast %cst_39 : f32 to vector<1x32xf32>
    %162 = arith.addf %160, %161 : vector<1x32xf32>
    %163 = math.rsqrt %162 : vector<1x32xf32>
    %c0_40 = arith.constant 0 : index
    %c0_41 = arith.constant 0 : index
    %164 = vector.load %arg3[%c0_40, %c0_41] : memref<32x128xf32, #tpu.memory_space<vmem>>, vector<32x128xf32>
    %c0_42 = arith.constant 0 : index
    %c0_43 = arith.constant 0 : index
    %165 = vector.load %arg4[%c0_42, %c0_43] : memref<1x128xf32, #tpu.memory_space<vmem>>, vector<1x128xf32>
    %166 = arith.mulf %153, %163 : vector<1x32xf32>
    %167 = vector.shape_cast %166 : vector<1x32xf32> to vector<1x32xf32>
    %168 = vector.broadcast %167 : vector<1x32xf32> to vector<8x32xf32>
    %cst_44 = arith.constant dense<0.000000e+00> : vector<8x128xf32>
    %169 = tpu.matmul %168, %164, %cst_44 {dimension_numbers = #tpu.dot_dimension_numbers<[1], [0], [0], [1], [0, 0, 1, 1], [], []>} : vector<8x32xf32>, vector<32x128xf32>, vector<8x128xf32> -> vector<8x128xf32>
    %170 = vector.extract_strided_slice %169 {offsets = [0, 0], sizes = [1, 128], strides = [1, 1]} : vector<8x128xf32> to vector<1x128xf32>
    %171 = arith.subf %165, %170 : vector<1x128xf32>
    %172 = vector.broadcast %163 : vector<1x32xf32> to vector<80x32xf32>
    %173 = arith.mulf %148, %172 : vector<80x32xf32>
    %cst_45 = arith.constant dense<0.000000e+00> : vector<80x128xf32>
    %174 = tpu.matmul %173, %164, %cst_45 {dimension_numbers = #tpu.dot_dimension_numbers<[1], [0], [0], [1], [0, 0, 1, 1], [], []>} : vector<80x32xf32>, vector<32x128xf32>, vector<80x128xf32> -> vector<80x128xf32>
    %175 = vector.broadcast %171 : vector<1x128xf32> to vector<80x128xf32>
    %176 = arith.addf %174, %175 : vector<80x128xf32>
    %c0_46 = arith.constant 0 : index
    %c0_47 = arith.constant 0 : index
    %177 = vector.load %arg6[%c0_46, %c0_47] : memref<80x128xf32, #tpu.memory_space<vmem>>, vector<80x128xf32>
    tpu.vector_store %arg6[%c0_46, %c0_47], %176 {strides = array<i32>} : memref<80x128xf32, #tpu.memory_space<vmem>>, vector<80x128xf32>,
    return
  }
}

</mosaic_0001>

<llo_original>
// kernel: tdnn_forward.1
$region0: #{tdnn_forward.1}
  #allocation0 [shape = 'u32[]', space=smem, size = 0x4, offset = 0x4, fixed_abs, tag = 'smem constant byte address 0x4 - core index']
  #allocation1 [shape = 'u32[72,128]{1,0:T(1,128)}', space=vmem, size = 0x9000, scoped, tag = 'internal scratch']
  %s0 = inlined_call_operand.vmem [shape: f32[104,24], index: 0, kind: input, shape index: {}]
  %s1 = inlined_call_operand.vmem [shape: f32[24,32], index: 1, kind: input, shape index: {}]
  %s2 = inlined_call_operand.vmem [shape: f32[10,32,32], index: 2, kind: input, shape index: {}]
  %s3 = inlined_call_operand.vmem [shape: f32[32,128], index: 3, kind: input, shape index: {}]
  %s4 = inlined_call_operand.vmem [shape: f32[1,128], index: 4, kind: input, shape index: {}]
  %s5 = inlined_call_operand.vmem [shape: f32[336,32], index: 5, kind: input, shape index: {}]
  %s6 = inlined_call_operand.vmem [shape: f32[80,128], index: 6, kind: output, shape index: {}]
  %s7 = sld [smem:[#allocation0]]
  $region34: #{tdnn_forward.1} parent=0
    _
  %s9 = ssub.s32 1, %s7
  %s10 = scalar_select 0, %s9, %s7
  // Predicated region
  $region2: #{tdnn_forward.1} parent=0 // pred_check
    _
  $region3: #{tdnn_forward.1} parent=0 // pred_check_branch
    %12 = sbr.rel (0) target = $region5
  $region4: #{tdnn_forward.1} parent=0 // pred_region
    _
  $region5: #{tdnn_forward.1} parent=0 // pred_fallthru
    _
  // Predicated region
  $region6: #{tdnn_forward.1} parent=0 // pred_check
    _
  $region7: #{tdnn_forward.1} parent=0 // pred_check_branch
    %14 = sbr.rel (0) target = $region9
  $region8: #{tdnn_forward.1} parent=0 // pred_region
    _
  $region9: #{tdnn_forward.1} parent=0 // pred_fallthru
    _
  // Predicated region
  $region10: #{tdnn_forward.1} parent=0 // pred_check
    _
  $region11: #{tdnn_forward.1} parent=0 // pred_check_branch
    %16 = sbr.rel (0) target = $region13
  $region12: #{tdnn_forward.1} parent=0 // pred_region
    _
  $region13: #{tdnn_forward.1} parent=0 // pred_fallthru
    _
  // Predicated region
  $region14: #{tdnn_forward.1} parent=0 // pred_check
    _
  $region15: #{tdnn_forward.1} parent=0 // pred_check_branch
    %18 = sbr.rel (0) target = $region17
  $region16: #{tdnn_forward.1} parent=0 // pred_region
    _
  $region17: #{tdnn_forward.1} parent=0 // pred_fallthru
    _
  // Predicated region
  $region18: #{tdnn_forward.1} parent=0 // pred_check
    _
  $region19: #{tdnn_forward.1} parent=0 // pred_check_branch
    %20 = sbr.rel (0) target = $region21
  $region20: #{tdnn_forward.1} parent=0 // pred_region
    _
  $region21: #{tdnn_forward.1} parent=0 // pred_fallthru
    _
  // Predicated region
  $region22: #{tdnn_forward.1} parent=0 // pred_check
    _
  $region23: #{tdnn_forward.1} parent=0 // pred_check_branch
    %22 = sbr.rel (0) target = $region25
  $region24: #{tdnn_forward.1} parent=0 // pred_region
    _
  $region25: #{tdnn_forward.1} parent=0 // pred_fallthru
    _
  %v23 = vld [vmem:[%s5] sm:$0xff]
  %v24 = vld [vmem:[%s5 + $0x8] sm:$0xff]
  %v25 = vld [vmem:[%s5 + $0x10] sm:$0xff]
  %v26 = vld [vmem:[%s5 + $0x18] sm:$0xff]
  %v27 = vld [vmem:[%s5 + $0x20] sm:$0xff]
  %v28 = vld [vmem:[%s5 + $0x28] sm:$0xff]
  %v29 = vld [vmem:[%s5 + $0x30] sm:$0xff]
  %v30 = vld [vmem:[%s5 + $0x38] sm:$0xff]
  %v31 = vld [vmem:[%s5 + $0x40] sm:$0xff]
  %v32 = vld [vmem:[%s5 + $0x48] sm:$0xff]
  %v33 = vld [vmem:[%s5 + $0x50] sm:$0xff]
  %v34 = vld [vmem:[%s5 + $0x58] sm:$0xff]
  %v35 = vld [vmem:[%s5 + $0x60] sm:$0xff]
  %v36 = vld [vmem:[%s5 + $0x68] sm:$0xff]
  %v37 = vld [vmem:[%s5 + $0x70] sm:$0xff]
  %v38 = vld [vmem:[%s5 + $0x78] sm:$0xff]
  %v39 = vld [vmem:[%s5 + $0x80] sm:$0xff]
  %v40 = vld [vmem:[%s5 + $0x88] sm:$0xff]
  %v41 = vld [vmem:[%s5 + $0x90] sm:$0xff]
  %v42 = vld [vmem:[%s5 + $0x98] sm:$0xff]
  %v43 = vld [vmem:[%s5 + $0xa0] sm:$0xff]
  %v44 = vld [vmem:[%s5 + $0xa8] sm:$0xff]
  %v45 = vld [vmem:[%s5 + $0xb0] sm:$0xff]
  %v46 = vld [vmem:[%s5 + $0xb8] sm:$0xff]
  %v47 = vld [vmem:[%s5 + $0xc0] sm:$0xff]
  %v48 = vld [vmem:[%s5 + $0xc8] sm:$0xff]
  %v49 = vld [vmem:[%s5 + $0xd0] sm:$0xff]
  %v50 = vld [vmem:[%s5 + $0xd8] sm:$0xff]
  %v51 = vld [vmem:[%s5 + $0xe8] sm:$0xff]
  %v52 = vld [vmem:[%s5 + $0xf0] sm:$0xff]
  %v53 = vld [vmem:[%s5 + $0xf8] sm:$0xff]
  %v54 = vld [vmem:[%s5 + $0x100] sm:$0xff]
  %v55 = vld [vmem:[%s5 + $0x108] sm:$0xff]
  %v56 = vld [vmem:[%s5 + $0x110] sm:$0xff]
  %v57 = vld [vmem:[%s5 + $0x118] sm:$0xff]
  %v58 = vld [vmem:[%s5 + $0x120] sm:$0xff]
  %v59 = vld [vmem:[%s5 + $0x128] sm:$0xff]
  %v60 = vld [vmem:[%s5 + $0x130] sm:$0xff]
  %v61 = vld [vmem:[%s2] sm:$0xff]
  %v62 = vld [vmem:[%s2 + $0x8] sm:$0xff]
  %v63 = vld [vmem:[%s2 + $0x10] sm:$0xff]
  %v64 = vld [vmem:[%s2 + $0x18] sm:$0xff]
  %v65 = vld [vmem:[%s2 + $0x20] sm:$0xff]
  %v66 = vld [vmem:[%s2 + $0x28] sm:$0xff]
  %v67 = vld [vmem:[%s2 + $0x30] sm:$0xff]
  %v68 = vld [vmem:[%s2 + $0x38] sm:$0xff]
  %v69 = vld [vmem:[%s2 + $0x40] sm:$0xff]
  %v70 = vld [vmem:[%s2 + $0x48] sm:$0xff]
  %v71 = vld [vmem:[%s2 + $0x50] sm:$0xff]
  %v72 = vld [vmem:[%s2 + $0x58] sm:$0xff]
  %v73 = vld [vmem:[%s2 + $0x60] sm:$0xff]
  %v74 = vld [vmem:[%s2 + $0x68] sm:$0xff]
  %v75 = vld [vmem:[%s2 + $0x70] sm:$0xff]
  %v76 = vld [vmem:[%s2 + $0x78] sm:$0xff]
  %v77 = vld [vmem:[%s2 + $0x80] sm:$0xff]
  %v78 = vld [vmem:[%s2 + $0x88] sm:$0xff]
  %v79 = vld [vmem:[%s2 + $0x90] sm:$0xff]
  %v80 = vld [vmem:[%s2 + $0x98] sm:$0xff]
  %v81 = vld [vmem:[%s2 + $0xa0] sm:$0xff]
  %v82 = vld [vmem:[%s2 + $0xa8] sm:$0xff]
  %v83 = vld [vmem:[%s2 + $0xb0] sm:$0xff]
  %v84 = vld [vmem:[%s2 + $0xb8] sm:$0xff]
  %v85 = vld [vmem:[%s2 + $0xc0] sm:$0xff]
  %v86 = vld [vmem:[%s2 + $0xc8] sm:$0xff]
  %v87 = vld [vmem:[%s2 + $0xd0] sm:$0xff]
  %v88 = vld [vmem:[%s2 + $0xd8] sm:$0xff]
  %v89 = vld [vmem:[%s2 + $0xe0] sm:$0xff]
  %v90 = vld [vmem:[%s2 + $0xe8] sm:$0xff]
  %v91 = vld [vmem:[%s2 + $0xf0] sm:$0xff]
  %v92 = vld [vmem:[%s2 + $0xf8] sm:$0xff]
  %v93 = vld [vmem:[%s2 + $0x100] sm:$0xff]
  %v94 = vld [vmem:[%s2 + $0x108] sm:$0xff]
  %v95 = vld [vmem:[%s2 + $0x110] sm:$0xff]
  %v96 = vld [vmem:[%s2 + $0x118] sm:$0xff]
  %v97 = vld [vmem:[%s2 + $0x120] sm:$0xff]
  %v98 = vld [vmem:[%s2 + $0x128] sm:$0xff]
  %v99 = vld [vmem:[%s2 + $0x130] sm:$0xff]
  %v100 = vld [vmem:[%s2 + $0x138] sm:$0xff]
  %v101 = vld [vmem:[%s0] sm:$0xff]
  %v102 = vld [vmem:[%s0 + $0x8] sm:$0xff]
  %v103 = vld [vmem:[%s0 + $0x10] sm:$0xff]
  %v104 = vld [vmem:[%s0 + $0x18] sm:$0xff]
  %v105 = vld [vmem:[%s0 + $0x20] sm:$0xff]
  %v106 = vld [vmem:[%s0 + $0x28] sm:$0xff]
  %v107 = vld [vmem:[%s0 + $0x30] sm:$0xff]
  %v108 = vld [vmem:[%s0 + $0x38] sm:$0xff]
  %v109 = vld [vmem:[%s0 + $0x40] sm:$0xff]
  %v110 = vld [vmem:[%s0 + $0x48] sm:$0xff]
  %v111 = vld [vmem:[%s0 + $0x50] sm:$0xff]
  %v112 = vld [vmem:[%s0 + $0x58] sm:$0xff]
  %v113 = vld [vmem:[%s0 + $0x60] sm:$0xff]
  %v114 = vld [vmem:[%s1] sm:$0xff]
  %v115 = vld [vmem:[%s1 + $0x8] sm:$0xff]
  %v116 = vld [vmem:[%s1 + $0x10] sm:$0xff]
  %v117 = vperm.slane %v23, 0
  %vm118 = vcmask 195584
  %v120 = vsel %vm118, %v101, 0
  %v123 = vsel %vm118, %v102, 0
  %v126 = vsel %vm118, %v103, 0
  %v129 = vsel %vm118, %v104, 0
  %v132 = vsel %vm118, %v105, 0
  %v135 = vsel %vm118, %v106, 0
  %v138 = vsel %vm118, %v107, 0
  %v141 = vsel %vm118, %v108, 0
  %v144 = vsel %vm118, %v109, 0
  %v147 = vsel %vm118, %v110, 0
  %v150 = vsel %vm118, %v111, 0
  %v153 = vsel %vm118, %v112, 0
  %v156 = vsel %vm118, %v113, 0
  %158 = vmatpush.msra.mxu0 0.0
  %159 = vmatpush.msra.mxu0 0.0
  %160 = vmatpush.msra.mxu0 0.0
  %161 = vmatpush.msra.mxu0 0.0
  %162 = vmatpush.msra.mxu0 0.0
  %163 = vmatpush.msra.mxu0 0.0
  %164 = vmatpush.msra.mxu0 0.0
  %165 = vmatpush.msra.mxu0 0.0
  %166 = vmatpush.msra.mxu0 0.0
  %167 = vmatpush.msra.mxu0 0.0
  %168 = vmatpush.msra.mxu0 0.0
  %169 = vmatpush.msra.mxu0 0.0
  %170 = vmatpush.msra.mxu0 0.0
  %171 = vmatpush.msra.mxu0 %v116
  %172 = vmatpush.msra.mxu0 %v115
  %173 = vmatpush.msra.mxu0 %v114
  %174 = vmatmul.f32.gmra.mxu0 %v120
  %v175 = vpop.f32.mrf.mxu0
  %v176 = vadd.f32 %v117, %v175
  %177 = vmatmul.f32.gmra.mxu0 %v123
  %v178 = vpop.f32.mrf.mxu0
  %v179 = vadd.f32 %v117, %v178
  %180 = vmatmul.f32.gmra.mxu0 %v126
  %v181 = vpop.f32.mrf.mxu0
  %v182 = vadd.f32 %v117, %v181
  %183 = vmatmul.f32.gmra.mxu0 %v129
  %v184 = vpop.f32.mrf.mxu0
  %v185 = vadd.f32 %v117, %v184
  %186 = vmatmul.f32.gmra.mxu0 %v132
  %v187 = vpop.f32.mrf.mxu0
  %v188 = vadd.f32 %v117, %v187
  %189 = vmatmul.f32.gmra.mxu0 %v135
  %v190 = vpop.f32.mrf.mxu0
  %v191 = vadd.f32 %v117, %v190
  %192 = vmatmul.f32.gmra.mxu0 %v138
  %v193 = vpop.f32.mrf.mxu0
  %v194 = vadd.f32 %v117, %v193
  %195 = vmatmul.f32.gmra.mxu0 %v141
  %v196 = vpop.f32.mrf.mxu0
  %v197 = vadd.f32 %v117, %v196
  %198 = vmatmul.f32.gmra.mxu0 %v144
  %v199 = vpop.f32.mrf.mxu0
  %v200 = vadd.f32 %v117, %v199
  %201 = vmatmul.f32.gmra.mxu0 %v147
  %v202 = vpop.f32.mrf.mxu0
  %v203 = vadd.f32 %v117, %v202
  %204 = vmatmul.f32.gmra.mxu0 %v150
  %v205 = vpop.f32.mrf.mxu0
  %v206 = vadd.f32 %v117, %v205
  %207 = vmatmul.f32.gmra.mxu0 %v153
  %v208 = vpop.f32.mrf.mxu0
  %v209 = vadd.f32 %v117, %v208
  %210 = vmatmul.f32.gmra.mxu0 %v156
  %v211 = vpop.f32.mrf.mxu0
  %v212 = vadd.f32 %v117, %v211
  %213 = vdwg.mxu0
  %v214 = vmax.f32 %v176, 0.0
  %v215 = vmax.f32 %v179, 0.0
  %v216 = vmax.f32 %v182, 0.0
  %v217 = vmax.f32 %v185, 0.0
  %v218 = vmax.f32 %v188, 0.0
  %v219 = vmax.f32 %v191, 0.0
  %v220 = vmax.f32 %v194, 0.0
  %v221 = vmax.f32 %v197, 0.0
  %v222 = vmax.f32 %v200, 0.0
  %v223 = vmax.f32 %v203, 0.0
  %v224 = vmax.f32 %v206, 0.0
  %v225 = vmax.f32 %v209, 0.0
  %v226 = vmax.f32 %v212, 0.0
  %v227 = vmul.f32 %v214, %v26
  %v228 = vmul.f32 %v215, %v27
  %v229 = vmul.f32 %v216, %v28
  %v230 = vmul.f32 %v217, %v29
  %v231 = vmul.f32 %v218, %v30
  %v232 = vmul.f32 %v219, %v31
  %v233 = vmul.f32 %v220, %v32
  %v234 = vmul.f32 %v221, %v33
  %v235 = vmul.f32 %v222, %v34
  %v236 = vmul.f32 %v223, %v35
  %v237 = vmul.f32 %v224, %v36
  %v238 = vmul.f32 %v225, %v37
  %v239 = vmul.f32 %v226, %v38
  %vm240 = vcmask 261120
  %v241 = vsel %vm240, %v227, 0.0
  %v242 = vsel %vm240, %v228, 0.0
  %v243 = vadd.f32 %v241, %v242
  %v244 = vsel %vm240, %v229, 0.0
  %v245 = vadd.f32 %v243, %v244
  %v246 = vsel %vm240, %v230, 0.0
  %v247 = vadd.f32 %v245, %v246
  %v248 = vsel %vm240, %v231, 0.0
  %v249 = vadd.f32 %v247, %v248
  %v250 = vsel %vm240, %v232, 0.0
  %v251 = vadd.f32 %v249, %v250
  %v252 = vsel %vm240, %v233, 0.0
  %v253 = vadd.f32 %v251, %v252
  %v254 = vsel %vm240, %v234, 0.0
  %v255 = vadd.f32 %v253, %v254
  %v256 = vsel %vm240, %v235, 0.0
  %v257 = vadd.f32 %v255, %v256
  %v258 = vsel %vm240, %v236, 0.0
  %v259 = vadd.f32 %v257, %v258
  %v260 = vsel %vm240, %v237, 0.0
  %v261 = vadd.f32 %v259, %v260
  %v262 = vsel %vm240, %v238, 0.0
  %v263 = vadd.f32 %v261, %v262
  %v264 = vsel %vm240, %v239, 0.0
  %v265 = vadd.f32 %v263, %v264
  %v266 = vrot.slane %v265, 4
  %v267 = vadd.f32 %v265, %v266
  %v268 = vrot.slane %v267, 2
  %v269 = vadd.f32 %v267, %v268
  %v270 = vrot.slane %v269, 1
  %v271 = vadd.f32 %v269, %v270
  %v272 = vmul.f32 %v271, 0.013157895
  %v273 = vmul.f32 %v227, %v214
  %v274 = vmul.f32 %v228, %v215
  %v275 = vmul.f32 %v229, %v216
  %v276 = vmul.f32 %v230, %v217
  %v277 = vmul.f32 %v231, %v218
  %v278 = vmul.f32 %v232, %v219
  %v279 = vmul.f32 %v233, %v220
  %v280 = vmul.f32 %v234, %v221
  %v281 = vmul.f32 %v235, %v222
  %v282 = vmul.f32 %v236, %v223
  %v283 = vmul.f32 %v237, %v224
  %v284 = vmul.f32 %v238, %v225
  %v285 = vmul.f32 %v239, %v226
  %v286 = vsel %vm240, %v273, 0.0
  %v287 = vsel %vm240, %v274, 0.0
  %v288 = vadd.f32 %v286, %v287
  %v289 = vsel %vm240, %v275, 0.0
  %v290 = vadd.f32 %v288, %v289
  %v291 = vsel %vm240, %v276, 0.0
  %v292 = vadd.f32 %v290, %v291
  %v293 = vsel %vm240, %v277, 0.0
  %v294 = vadd.f32 %v292, %v293
  %v295 = vsel %vm240, %v278, 0.0
  %v296 = vadd.f32 %v294, %v295
  %v297 = vsel %vm240, %v279, 0.0
  %v298 = vadd.f32 %v296, %v297
  %v299 = vsel %vm240, %v280, 0.0
  %v300 = vadd.f32 %v298, %v299
  %v301 = vsel %vm240, %v281, 0.0
  %v302 = vadd.f32 %v300, %v301
  %v303 = vsel %vm240, %v282, 0.0
  %v304 = vadd.f32 %v302, %v303
  %v305 = vsel %vm240, %v283, 0.0
  %v306 = vadd.f32 %v304, %v305
  %v307 = vsel %vm240, %v284, 0.0
  %v308 = vadd.f32 %v306, %v307
  %v309 = vsel %vm240, %v285, 0.0
  %v310 = vadd.f32 %v308, %v309
  %v311 = vrot.slane %v310, 4
  %v312 = vadd.f32 %v310, %v311
  %v313 = vrot.slane %v312, 2
  %v314 = vadd.f32 %v312, %v313
  %v315 = vrot.slane %v314, 1
  %v316 = vadd.f32 %v314, %v315
  %v317 = vmul.f32 %v316, 0.013157895
  %v318 = vmul.f32 %v272, %v272
  %v319 = vsub.f32 %v317, %v318
  %v320 = vadd.f32 %v319, 1e-05
  %v321 = vrsqrt.pop %v320
  %v322 = vmul.f32 %v321, %v320
  %v323 = vmul.f32 %v322, %v321
  %v324 = vmul.f32 0.5, %v323
  %v325 = vsub.f32 1.5, %v324
  %v326 = vmul.f32 %v321, %v325
  %vm327 = vweird.f32 %v320
  %vm328 = vweird.f32 %v321
  %vm329 = vmor %vm327, %vm328
  %v330 = vsel %vm329, %v321, %v326
  %v331 = vmul.f32 %v272, %v330
  %v332 = vadd.f32 %v61, %v65
  %v333 = vadd.f32 %v62, %v66
  %v334 = vadd.f32 %v63, %v67
  %v335 = vadd.f32 %v64, %v68
  %v336 = vadd.f32 %v332, %v69
  %v337 = vadd.f32 %v333, %v70
  %v338 = vadd.f32 %v334, %v71
  %v339 = vadd.f32 %v335, %v72
  %v340 = vadd.f32 %v336, %v73
  %v341 = vadd.f32 %v337, %v74
  %v342 = vadd.f32 %v338, %v75
  %v343 = vadd.f32 %v339, %v76
  %v344 = vadd.f32 %v340, %v77
  %v345 = vadd.f32 %v341, %v78
  %v346 = vadd.f32 %v342, %v79
  %v347 = vadd.f32 %v343, %v80
  %v349 = vsel %vm240, %v331, 0
  %351 = vmatpush.msra.mxu0 0.0
  %352 = vmatpush.msra.mxu0 0.0
  %353 = vmatpush.msra.mxu0 0.0
  %354 = vmatpush.msra.mxu0 0.0
  %355 = vmatpush.msra.mxu0 0.0
  %356 = vmatpush.msra.mxu0 0.0
  %357 = vmatpush.msra.mxu0 0.0
  %358 = vmatpush.msra.mxu0 0.0
  %359 = vmatpush.msra.mxu0 0.0
  %360 = vmatpush.msra.mxu0 0.0
  %361 = vmatpush.msra.mxu0 0.0
  %362 = vmatpush.msra.mxu0 0.0
  %363 = vmatpush.msra.mxu0 %v347
  %364 = vmatpush.msra.mxu0 %v346
  %365 = vmatpush.msra.mxu0 %v345
  %366 = vmatpush.msra.mxu0 %v344
  %367 = vmatmul.f32.gmra.mxu0 %v349
  %v368 = vpop.f32.mrf.mxu0
  %v369 = vadd.f32 0.0, %v368
  %370 = vdwg.mxu0
  %v371 = vsub.f32 %v24, %v369
  %v372 = vmul.f32 %v214, %v330
  %v373 = vmul.f32 %v215, %v330
  %v374 = vmul.f32 %v216, %v330
  %v375 = vmul.f32 %v217, %v330
  %v376 = vmul.f32 %v218, %v330
  %v377 = vmul.f32 %v219, %v330
  %v378 = vmul.f32 %v220, %v330
  %v379 = vmul.f32 %v221, %v330
  %v380 = vmul.f32 %v222, %v330
  %v381 = vmul.f32 %v223, %v330
  %v382 = vmul.f32 %v224, %v330
  %v383 = vmul.f32 %v225, %v330
  %v384 = vmul.f32 %v226, %v330
  %vm398 = vcmask 1045504
  %v399 = vrot.slane %v372, 2
  %v400 = vrot.slane %v373, 2
  %v401 = vsel %vm398, %v399, %v400
  %v402 = vrot.slane %v374, 2
  %v403 = vsel %vm398, %v400, %v402
  %v404 = vrot.slane %v375, 2
  %v405 = vsel %vm398, %v402, %v404
  %v406 = vrot.slane %v376, 2
  %v407 = vsel %vm398, %v404, %v406
  %v408 = vrot.slane %v377, 2
  %v409 = vsel %vm398, %v406, %v408
  %v410 = vrot.slane %v378, 2
  %v411 = vsel %vm398, %v408, %v410
  %v412 = vrot.slane %v379, 2
  %v413 = vsel %vm398, %v410, %v412
  %v414 = vrot.slane %v380, 2
  %v415 = vsel %vm398, %v412, %v414
  %v416 = vrot.slane %v381, 2
  %v417 = vsel %vm398, %v414, %v416
  %v418 = vrot.slane %v382, 2
  %v419 = vsel %vm398, %v416, %v418
  %v420 = vrot.slane %v383, 2
  %v421 = vsel %vm398, %v418, %v420
  %v422 = vrot.slane %v384, 2
  %v423 = vsel %vm398, %v420, %v422
  %v424 = vsel %vm240, %v401, 0
  %v426 = vsel %vm240, %v403, 0
  %v428 = vsel %vm240, %v405, 0
  %v430 = vsel %vm240, %v407, 0
  %v432 = vsel %vm240, %v409, 0
  %v434 = vsel %vm240, %v411, 0
  %v436 = vsel %vm240, %v413, 0
  %v438 = vsel %vm240, %v415, 0
  %v440 = vsel %vm240, %v417, 0
  %v442 = vsel %vm240, %v419, 0
  %v444 = vsel %vm240, %v421, 0
  %v446 = vsel %vm240, %v423, 0
  %448 = vmatpush.msra.mxu0 0.0
  %449 = vmatpush.msra.mxu0 0.0
  %450 = vmatpush.msra.mxu0 0.0
  %451 = vmatpush.msra.mxu0 0.0
  %452 = vmatpush.msra.mxu0 0.0
  %453 = vmatpush.msra.mxu0 0.0
  %454 = vmatpush.msra.mxu0 0.0
  %455 = vmatpush.msra.mxu0 0.0
  %456 = vmatpush.msra.mxu0 0.0
  %457 = vmatpush.msra.mxu0 0.0
  %458 = vmatpush.msra.mxu0 0.0
  %459 = vmatpush.msra.mxu0 0.0
  %460 = vmatpush.msra.mxu0 %v68
  %461 = vmatpush.msra.mxu0 %v67
  %462 = vmatpush.msra.mxu0 %v66
  %463 = vmatpush.msra.mxu0 %v65
  %464 = vmatmul.f32.gmra.mxu0 %v424
  %v465 = vpop.f32.mrf.mxu0
  %v466 = vadd.f32 0.0, %v465
  %467 = vmatmul.f32.gmra.mxu0 %v426
  %v468 = vpop.f32.mrf.mxu0
  %v469 = vadd.f32 0.0, %v468
  %470 = vmatmul.f32.gmra.mxu0 %v428
  %v471 = vpop.f32.mrf.mxu0
  %v472 = vadd.f32 0.0, %v471
  %473 = vmatmul.f32.gmra.mxu0 %v430
  %v474 = vpop.f32.mrf.mxu0
  %v475 = vadd.f32 0.0, %v474
  %476 = vmatmul.f32.gmra.mxu0 %v432
  %v477 = vpop.f32.mrf.mxu0
  %v478 = vadd.f32 0.0, %v477
  %479 = vmatmul.f32.gmra.mxu0 %v434
  %v480 = vpop.f32.mrf.mxu0
  %v481 = vadd.f32 0.0, %v480
  %482 = vmatmul.f32.gmra.mxu0 %v436
  %v483 = vpop.f32.mrf.mxu0
  %v484 = vadd.f32 0.0, %v483
  %485 = vmatmul.f32.gmra.mxu0 %v438
  %v486 = vpop.f32.mrf.mxu0
  %v487 = vadd.f32 0.0, %v486
  %488 = vmatmul.f32.gmra.mxu0 %v440
  %v489 = vpop.f32.mrf.mxu0
  %v490 = vadd.f32 0.0, %v489
  %491 = vmatmul.f32.gmra.mxu0 %v442
  %v492 = vpop.f32.mrf.mxu0
  %v493 = vadd.f32 0.0, %v492
  %494 = vmatmul.f32.gmra.mxu0 %v444
  %v495 = vpop.f32.mrf.mxu0
  %v496 = vadd.f32 0.0, %v495
  %497 = vmatmul.f32.gmra.mxu0 %v446
  %v498 = vpop.f32.mrf.mxu0
  %v499 = vadd.f32 0.0, %v498
  %500 = vdwg.mxu0
  %v501 = vsel %vm240, %v372, 0
  %v503 = vsel %vm240, %v373, 0
  %v505 = vsel %vm240, %v374, 0
  %v507 = vsel %vm240, %v375, 0
  %v509 = vsel %vm240, %v376, 0
  %v511 = vsel %vm240, %v377, 0
  %v513 = vsel %vm240, %v378, 0
  %v515 = vsel %vm240, %v379, 0
  %v517 = vsel %vm240, %v380, 0
  %v519 = vsel %vm240, %v381, 0
  %v521 = vsel %vm240, %v382, 0
  %v523 = vsel %vm240, %v383, 0
  %525 = vmatpush.msra.mxu0 0.0
  %526 = vmatpush.msra.mxu0 0.0
  %527 = vmatpush.msra.mxu0 0.0
  %528 = vmatpush.msra.mxu0 0.0
  %529 = vmatpush.msra.mxu0 0.0
  %530 = vmatpush.msra.mxu0 0.0
  %531 = vmatpush.msra.mxu0 0.0
  %532 = vmatpush.msra.mxu0 0.0
  %533 = vmatpush.msra.mxu0 0.0
  %534 = vmatpush.msra.mxu0 0.0
  %535 = vmatpush.msra.mxu0 0.0
  %536 = vmatpush.msra.mxu0 0.0
  %537 = vmatpush.msra.mxu0 %v64
  %538 = vmatpush.msra.mxu0 %v63
  %539 = vmatpush.msra.mxu0 %v62
  %540 = vmatpush.msra.mxu0 %v61
  %541 = vmatmul.f32.gmra.mxu0 %v501
  %v542 = vpop.f32.mrf.mxu0
  %v543 = vadd.f32 %v466, %v542
  %544 = vmatmul.f32.gmra.mxu0 %v503
  %v545 = vpop.f32.mrf.mxu0
  %v546 = vadd.f32 %v469, %v545
  %547 = vmatmul.f32.gmra.mxu0 %v505
  %v548 = vpop.f32.mrf.mxu0
  %v549 = vadd.f32 %v472, %v548
  %550 = vmatmul.f32.gmra.mxu0 %v507
  %v551 = vpop.f32.mrf.mxu0
  %v552 = vadd.f32 %v475, %v551
  %553 = vmatmul.f32.gmra.mxu0 %v509
  %v554 = vpop.f32.mrf.mxu0
  %v555 = vadd.f32 %v478, %v554
  %556 = vmatmul.f32.gmra.mxu0 %v511
  %v557 = vpop.f32.mrf.mxu0
  %v558 = vadd.f32 %v481, %v557
  %559 = vmatmul.f32.gmra.mxu0 %v513
  %v560 = vpop.f32.mrf.mxu0
  %v561 = vadd.f32 %v484, %v560
  %562 = vmatmul.f32.gmra.mxu0 %v515
  %v563 = vpop.f32.mrf.mxu0
  %v564 = vadd.f32 %v487, %v563
  %565 = vmatmul.f32.gmra.mxu0 %v517
  %v566 = vpop.f32.mrf.mxu0
  %v567 = vadd.f32 %v490, %v566
  %568 = vmatmul.f32.gmra.mxu0 %v519
  %v569 = vpop.f32.mrf.mxu0
  %v570 = vadd.f32 %v493, %v569
  %571 = vmatmul.f32.gmra.mxu0 %v521
  %v572 = vpop.f32.mrf.mxu0
  %v573 = vadd.f32 %v496, %v572
  %574 = vmatmul.f32.gmra.mxu0 %v523
  %v575 = vpop.f32.mrf.mxu0
  %v576 = vadd.f32 %v499, %v575
  %577 = vdwg.mxu0
  %vm578 = vcmask 1043456
  %v579 = vrot.slane %v372, 4
  %v580 = vrot.slane %v373, 4
  %v581 = vsel %vm578, %v579, %v580
  %v582 = vrot.slane %v374, 4
  %v583 = vsel %vm578, %v580, %v582
  %v584 = vrot.slane %v375, 4
  %v585 = vsel %vm578, %v582, %v584
  %v586 = vrot.slane %v376, 4
  %v587 = vsel %vm578, %v584, %v586
  %v588 = vrot.slane %v377, 4
  %v589 = vsel %vm578, %v586, %v588
  %v590 = vrot.slane %v378, 4
  %v591 = vsel %vm578, %v588, %v590
  %v592 = vrot.slane %v379, 4
  %v593 = vsel %vm578, %v590, %v592
  %v594 = vrot.slane %v380, 4
  %v595 = vsel %vm578, %v592, %v594
  %v596 = vrot.slane %v381, 4
  %v597 = vsel %vm578, %v594, %v596
  %v598 = vrot.slane %v382, 4
  %v599 = vsel %vm578, %v596, %v598
  %v600 = vrot.slane %v383, 4
  %v601 = vsel %vm578, %v598, %v600
  %v602 = vrot.slane %v384, 4
  %v603 = vsel %vm578, %v600, %v602
  %v604 = vsel %vm240, %v581, 0
  %v606 = vsel %vm240, %v583, 0
  %v608 = vsel %vm240, %v585, 0
  %v610 = vsel %vm240, %v587, 0
  %v612 = vsel %vm240, %v589, 0
  %v614 = vsel %vm240, %v591, 0
  %v616 = vsel %vm240, %v593, 0
  %v618 = vsel %vm240, %v595, 0
  %v620 = vsel %vm240, %v597, 0
  %v622 = vsel %vm240, %v599, 0
  %v624 = vsel %vm240, %v601, 0
  %v626 = vsel %vm240, %v603, 0
  %628 = vmatpush.msra.mxu0 0.0
  %629 = vmatpush.msra.mxu0 0.0
  %630 = vmatpush.msra.mxu0 0.0
  %631 = vmatpush.msra.mxu0 0.0
  %632 = vmatpush.msra.mxu0 0.0
  %633 = vmatpush.msra.mxu0 0.0
  %634 = vmatpush.msra.mxu0 0.0
  %635 = vmatpush.msra.mxu0 0.0
  %636 = vmatpush.msra.mxu0 0.0
  %637 = vmatpush.msra.mxu0 0.0
  %638 = vmatpush.msra.mxu0 0.0
  %639 = vmatpush.msra.mxu0 0.0
  %640 = vmatpush.msra.mxu0 %v72
  %641 = vmatpush.msra.mxu0 %v71
  %642 = vmatpush.msra.mxu0 %v70
  %643 = vmatpush.msra.mxu0 %v69
  %644 = vmatmul.f32.gmra.mxu0 %v604
  %v645 = vpop.f32.mrf.mxu0
  %v646 = vadd.f32 0.0, %v645
  %647 = vmatmul.f32.gmra.mxu0 %v606
  %v648 = vpop.f32.mrf.mxu0
  %v649 = vadd.f32 0.0, %v648
  %650 = vmatmul.f32.gmra.mxu0 %v608
  %v651 = vpop.f32.mrf.mxu0
  %v652 = vadd.f32 0.0, %v651
  %653 = vmatmul.f32.gmra.mxu0 %v610
  %v654 = vpop.f32.mrf.mxu0
  %v655 = vadd.f32 0.0, %v654
  %656 = vmatmul.f32.gmra.mxu0 %v612
  %v657 = vpop.f32.mrf.mxu0
  %v658 = vadd.f32 0.0, %v657
  %659 = vmatmul.f32.gmra.mxu0 %v614
  %v660 = vpop.f32.mrf.mxu0
  %v661 = vadd.f32 0.0, %v660
  %662 = vmatmul.f32.gmra.mxu0 %v616
  %v663 = vpop.f32.mrf.mxu0
  %v664 = vadd.f32 0.0, %v663
  %665 = vmatmul.f32.gmra.mxu0 %v618
  %v666 = vpop.f32.mrf.mxu0
  %v667 = vadd.f32 0.0, %v666
  %668 = vmatmul.f32.gmra.mxu0 %v620
  %v669 = vpop.f32.mrf.mxu0
  %v670 = vadd.f32 0.0, %v669
  %671 = vmatmul.f32.gmra.mxu0 %v622
  %v672 = vpop.f32.mrf.mxu0
  %v673 = vadd.f32 0.0, %v672
  %674 = vmatmul.f32.gmra.mxu0 %v624
  %v675 = vpop.f32.mrf.mxu0
  %v676 = vadd.f32 0.0, %v675
  %677 = vmatmul.f32.gmra.mxu0 %v626
  %v678 = vpop.f32.mrf.mxu0
  %v679 = vadd.f32 0.0, %v678
  %680 = vdwg.mxu0
  %v681 = vadd.f32 %v543, %v646
  %v682 = vadd.f32 %v546, %v649
  %v683 = vadd.f32 %v549, %v652
  %v684 = vadd.f32 %v552, %v655
  %v685 = vadd.f32 %v555, %v658
  %v686 = vadd.f32 %v558, %v661
  %v687 = vadd.f32 %v561, %v664
  %v688 = vadd.f32 %v564, %v667
  %v689 = vadd.f32 %v567, %v670
  %v690 = vadd.f32 %v570, %v673
  %v691 = vadd.f32 %v573, %v676
  %v692 = vadd.f32 %v576, %v679
  %vm693 = vcmask 1041408
  %v694 = vrot.slane %v372, 6
  %v695 = vrot.slane %v373, 6
  %v696 = vsel %vm693, %v694, %v695
  %v697 = vrot.slane %v374, 6
  %v698 = vsel %vm693, %v695, %v697
  %v699 = vrot.slane %v375, 6
  %v700 = vsel %vm693, %v697, %v699
  %v701 = vrot.slane %v376, 6
  %v702 = vsel %vm693, %v699, %v701
  %v703 = vrot.slane %v377, 6
  %v704 = vsel %vm693, %v701, %v703
  %v705 = vrot.slane %v378, 6
  %v706 = vsel %vm693, %v703, %v705
  %v707 = vrot.slane %v379, 6
  %v708 = vsel %vm693, %v705, %v707
  %v709 = vrot.slane %v380, 6
  %v710 = vsel %vm693, %v707, %v709
  %v711 = vrot.slane %v381, 6
  %v712 = vsel %vm693, %v709, %v711
  %v713 = vrot.slane %v382, 6
  %v714 = vsel %vm693, %v711, %v713
  %v715 = vrot.slane %v383, 6
  %v716 = vsel %vm693, %v713, %v715
  %v717 = vrot.slane %v384, 6
  %v718 = vsel %vm693, %v715, %v717
  %v719 = vsel %vm240, %v696, 0
  %v721 = vsel %vm240, %v698, 0
  %v723 = vsel %vm240, %v700, 0
  %v725 = vsel %vm240, %v702, 0
  %v727 = vsel %vm240, %v704, 0
  %v729 = vsel %vm240, %v706, 0
  %v731 = vsel %vm240, %v708, 0
  %v733 = vsel %vm240, %v710, 0
  %v735 = vsel %vm240, %v712, 0
  %v737 = vsel %vm240, %v714, 0
  %v739 = vsel %vm240, %v716, 0
  %v741 = vsel %vm240, %v718, 0
  %743 = vmatpush.msra.mxu0 0.0
  %744 = vmatpush.msra.mxu0 0.0
  %745 = vmatpush.msra.mxu0 0.0
  %746 = vmatpush.msra.mxu0 0.0
  %747 = vmatpush.msra.mxu0 0.0
  %748 = vmatpush.msra.mxu0 0.0
  %749 = vmatpush.msra.mxu0 0.0
  %750 = vmatpush.msra.mxu0 0.0
  %751 = vmatpush.msra.mxu0 0.0
  %752 = vmatpush.msra.mxu0 0.0
  %753 = vmatpush.msra.mxu0 0.0
  %754 = vmatpush.msra.mxu0 0.0
  %755 = vmatpush.msra.mxu0 %v76
  %756 = vmatpush.msra.mxu0 %v75
  %757 = vmatpush.msra.mxu0 %v74
  %758 = vmatpush.msra.mxu0 %v73
  %759 = vmatmul.f32.gmra.mxu0 %v719
  %v760 = vpop.f32.mrf.mxu0
  %v761 = vadd.f32 0.0, %v760
  %762 = vmatmul.f32.gmra.mxu0 %v721
  %v763 = vpop.f32.mrf.mxu0
  %v764 = vadd.f32 0.0, %v763
  %765 = vmatmul.f32.gmra.mxu0 %v723
  %v766 = vpop.f32.mrf.mxu0
  %v767 = vadd.f32 0.0, %v766
  %768 = vmatmul.f32.gmra.mxu0 %v725
  %v769 = vpop.f32.mrf.mxu0
  %v770 = vadd.f32 0.0, %v769
  %771 = vmatmul.f32.gmra.mxu0 %v727
  %v772 = vpop.f32.mrf.mxu0
  %v773 = vadd.f32 0.0, %v772
  %774 = vmatmul.f32.gmra.mxu0 %v729
  %v775 = vpop.f32.mrf.mxu0
  %v776 = vadd.f32 0.0, %v775
  %777 = vmatmul.f32.gmra.mxu0 %v731
  %v778 = vpop.f32.mrf.mxu0
  %v779 = vadd.f32 0.0, %v778
  %780 = vmatmul.f32.gmra.mxu0 %v733
  %v781 = vpop.f32.mrf.mxu0
  %v782 = vadd.f32 0.0, %v781
  %783 = vmatmul.f32.gmra.mxu0 %v735
  %v784 = vpop.f32.mrf.mxu0
  %v785 = vadd.f32 0.0, %v784
  %786 = vmatmul.f32.gmra.mxu0 %v737
  %v787 = vpop.f32.mrf.mxu0
  %v788 = vadd.f32 0.0, %v787
  %789 = vmatmul.f32.gmra.mxu0 %v739
  %v790 = vpop.f32.mrf.mxu0
  %v791 = vadd.f32 0.0, %v790
  %792 = vmatmul.f32.gmra.mxu0 %v741
  %v793 = vpop.f32.mrf.mxu0
  %v794 = vadd.f32 0.0, %v793
  %795 = vdwg.mxu0
  %v796 = vadd.f32 %v681, %v761
  %v797 = vadd.f32 %v682, %v764
  %v798 = vadd.f32 %v683, %v767
  %v799 = vadd.f32 %v684, %v770
  %v800 = vadd.f32 %v685, %v773
  %v801 = vadd.f32 %v686, %v776
  %v802 = vadd.f32 %v687, %v779
  %v803 = vadd.f32 %v688, %v782
  %v804 = vadd.f32 %v689, %v785
  %v805 = vadd.f32 %v690, %v788
  %v806 = vadd.f32 %v691, %v791
  %v807 = vadd.f32 %v692, %v794
  %v808 = vsel %vm240, %v384, 0
  %810 = vmatpush.msra.mxu0 0.0
  %811 = vmatpush.msra.mxu0 0.0
  %812 = vmatpush.msra.mxu0 0.0
  %813 = vmatpush.msra.mxu0 0.0
  %814 = vmatpush.msra.mxu0 0.0
  %815 = vmatpush.msra.mxu0 0.0
  %816 = vmatpush.msra.mxu0 0.0
  %817 = vmatpush.msra.mxu0 0.0
  %818 = vmatpush.msra.mxu0 0.0
  %819 = vmatpush.msra.mxu0 0.0
  %820 = vmatpush.msra.mxu0 0.0
  %821 = vmatpush.msra.mxu0 0.0
  %822 = vmatpush.msra.mxu0 %v80
  %823 = vmatpush.msra.mxu0 %v79
  %824 = vmatpush.msra.mxu0 %v78
  %825 = vmatpush.msra.mxu0 %v77
  %826 = vmatmul.f32.gmra.mxu0 %v503
  %v827 = vpop.f32.mrf.mxu0
  %v828 = vadd.f32 0.0, %v827
  %829 = vmatmul.f32.gmra.mxu0 %v505
  %v830 = vpop.f32.mrf.mxu0
  %v831 = vadd.f32 0.0, %v830
  %832 = vmatmul.f32.gmra.mxu0 %v507
  %v833 = vpop.f32.mrf.mxu0
  %v834 = vadd.f32 0.0, %v833
  %835 = vmatmul.f32.gmra.mxu0 %v509
  %v836 = vpop.f32.mrf.mxu0
  %v837 = vadd.f32 0.0, %v836
  %838 = vmatmul.f32.gmra.mxu0 %v511
  %v839 = vpop.f32.mrf.mxu0
  %v840 = vadd.f32 0.0, %v839
  %841 = vmatmul.f32.gmra.mxu0 %v513
  %v842 = vpop.f32.mrf.mxu0
  %v843 = vadd.f32 0.0, %v842
  %844 = vmatmul.f32.gmra.mxu0 %v515
  %v845 = vpop.f32.mrf.mxu0
  %v846 = vadd.f32 0.0, %v845
  %847 = vmatmul.f32.gmra.mxu0 %v517
  %v848 = vpop.f32.mrf.mxu0
  %v849 = vadd.f32 0.0, %v848
  %850 = vmatmul.f32.gmra.mxu0 %v519
  %v851 = vpop.f32.mrf.mxu0
  %v852 = vadd.f32 0.0, %v851
  %853 = vmatmul.f32.gmra.mxu0 %v521
  %v854 = vpop.f32.mrf.mxu0
  %v855 = vadd.f32 0.0, %v854
  %856 = vmatmul.f32.gmra.mxu0 %v523
  %v857 = vpop.f32.mrf.mxu0
  %v858 = vadd.f32 0.0, %v857
  %859 = vmatmul.f32.gmra.mxu0 %v808
  %v860 = vpop.f32.mrf.mxu0
  %v861 = vadd.f32 0.0, %v860
  %862 = vdwg.mxu0
  %v863 = vadd.f32 %v796, %v828
  %v864 = vadd.f32 %v797, %v831
  %v865 = vadd.f32 %v798, %v834
  %v866 = vadd.f32 %v799, %v837
  %v867 = vadd.f32 %v800, %v840
  %v868 = vadd.f32 %v801, %v843
  %v869 = vadd.f32 %v802, %v846
  %v870 = vadd.f32 %v803, %v849
  %v871 = vadd.f32 %v804, %v852
  %v872 = vadd.f32 %v805, %v855
  %v873 = vadd.f32 %v806, %v858
  %v874 = vadd.f32 %v807, %v861
  %v875 = vperm.slane %v371, 0
  %v876 = vadd.f32 %v863, %v875
  %v877 = vadd.f32 %v864, %v875
  %v878 = vadd.f32 %v865, %v875
  %v879 = vadd.f32 %v866, %v875
  %v880 = vadd.f32 %v867, %v875
  %v881 = vadd.f32 %v868, %v875
  %v882 = vadd.f32 %v869, %v875
  %v883 = vadd.f32 %v870, %v875
  %v884 = vadd.f32 %v871, %v875
  %v885 = vadd.f32 %v872, %v875
  %v886 = vadd.f32 %v873, %v875
  %v887 = vadd.f32 %v874, %v875
  %v888 = vmax.f32 %v876, 0.0
  %v889 = vmax.f32 %v877, 0.0
  %v890 = vmax.f32 %v878, 0.0
  %v891 = vmax.f32 %v879, 0.0
  %v892 = vmax.f32 %v880, 0.0
  %v893 = vmax.f32 %v881, 0.0
  %v894 = vmax.f32 %v882, 0.0
  %v895 = vmax.f32 %v883, 0.0
  %v896 = vmax.f32 %v884, 0.0
  %v897 = vmax.f32 %v885, 0.0
  %v898 = vmax.f32 %v886, 0.0
  %v899 = vmax.f32 %v887, 0.0
  %v900 = vmul.f32 %v888, %v39
  %v901 = vmul.f32 %v889, %v40
  %v902 = vmul.f32 %v890, %v41
  %v903 = vmul.f32 %v891, %v42
  %v904 = vmul.f32 %v892, %v43
  %v905 = vmul.f32 %v893, %v44
  %v906 = vmul.f32 %v894, %v45
  %v907 = vmul.f32 %v895, %v46
  %v908 = vmul.f32 %v896, %v47
  %v909 = vmul.f32 %v897, %v48
  %v910 = vmul.f32 %v898, %v49
  %v911 = vmul.f32 %v899, %v50
  %v912 = vsel %vm240, %v900, 0.0
  %v913 = vsel %vm240, %v901, 0.0
  %v914 = vadd.f32 %v912, %v913
  %v915 = vsel %vm240, %v902, 0.0
  %v916 = vadd.f32 %v914, %v915
  %v917 = vsel %vm240, %v903, 0.0
  %v918 = vadd.f32 %v916, %v917
  %v919 = vsel %vm240, %v904, 0.0
  %v920 = vadd.f32 %v918, %v919
  %v921 = vsel %vm240, %v905, 0.0
  %v922 = vadd.f32 %v920, %v921
  %v923 = vsel %vm240, %v906, 0.0
  %v924 = vadd.f32 %v922, %v923
  %v925 = vsel %vm240, %v907, 0.0
  %v926 = vadd.f32 %v924, %v925
  %v927 = vsel %vm240, %v908, 0.0
  %v928 = vadd.f32 %v926, %v927
  %v929 = vsel %vm240, %v909, 0.0
  %v930 = vadd.f32 %v928, %v929
  %v931 = vsel %vm240, %v910, 0.0
  %v932 = vadd.f32 %v930, %v931
  %v933 = vsel %vm240, %v911, 0.0
  %v934 = vadd.f32 %v932, %v933
  %v935 = vrot.slane %v934, 4
  %v936 = vadd.f32 %v934, %v935
  %v937 = vrot.slane %v936, 2
  %v938 = vadd.f32 %v936, %v937
  %v939 = vrot.slane %v938, 1
  %v940 = vadd.f32 %v938, %v939
  %v941 = vmul.f32 %v940, 0.016666668
  %v942 = vmul.f32 %v900, %v888
  %v943 = vmul.f32 %v901, %v889
  %v944 = vmul.f32 %v902, %v890
  %v945 = vmul.f32 %v903, %v891
  %v946 = vmul.f32 %v904, %v892
  %v947 = vmul.f32 %v905, %v893
  %v948 = vmul.f32 %v906, %v894
  %v949 = vmul.f32 %v907, %v895
  %v950 = vmul.f32 %v908, %v896
  %v951 = vmul.f32 %v909, %v897
  %v952 = vmul.f32 %v910, %v898
  %v953 = vmul.f32 %v911, %v899
  %v954 = vsel %vm240, %v942, 0.0
  %v955 = vsel %vm240, %v943, 0.0
  %v956 = vadd.f32 %v954, %v955
  %v957 = vsel %vm240, %v944, 0.0
  %v958 = vadd.f32 %v956, %v957
  %v959 = vsel %vm240, %v945, 0.0
  %v960 = vadd.f32 %v958, %v959
  %v961 = vsel %vm240, %v946, 0.0
  %v962 = vadd.f32 %v960, %v961
  %v963 = vsel %vm240, %v947, 0.0
  %v964 = vadd.f32 %v962, %v963
  %v965 = vsel %vm240, %v948, 0.0
  %v966 = vadd.f32 %v964, %v965
  %v967 = vsel %vm240, %v949, 0.0
  %v968 = vadd.f32 %v966, %v967
  %v969 = vsel %vm240, %v950, 0.0
  %v970 = vadd.f32 %v968, %v969
  %v971 = vsel %vm240, %v951, 0.0
  %v972 = vadd.f32 %v970, %v971
  %v973 = vsel %vm240, %v952, 0.0
  %v974 = vadd.f32 %v972, %v973
  %v975 = vsel %vm240, %v953, 0.0
  %v976 = vadd.f32 %v974, %v975
  %v977 = vrot.slane %v976, 4
  %v978 = vadd.f32 %v976, %v977
  %v979 = vrot.slane %v978, 2
  %v980 = vadd.f32 %v978, %v979
  %v981 = vrot.slane %v980, 1
  %v982 = vadd.f32 %v980, %v981
  %v983 = vmul.f32 %v982, 0.016666668
  %v984 = vmul.f32 %v941, %v941
  %v985 = vsub.f32 %v983, %v984
  %v986 = vadd.f32 %v985, 1e-05
  %v987 = vrsqrt.pop %v986
  %v988 = vmul.f32 %v987, %v986
  %v989 = vmul.f32 %v988, %v987
  %v990 = vmul.f32 0.5, %v989
  %v991 = vsub.f32 1.5, %v990
  %v992 = vmul.f32 %v987, %v991
  %vm993 = vweird.f32 %v986
  %vm994 = vweird.f32 %v987
  %vm995 = vmor %vm993, %vm994
  %v996 = vsel %vm995, %v987, %v992
  %v997 = vmul.f32 %v941, %v996
  %v998 = vadd.f32 %v81, %v85
  %v999 = vadd.f32 %v82, %v86
  %v1000 = vadd.f32 %v83, %v87
  %v1001 = vadd.f32 %v84, %v88
  %v1002 = vadd.f32 %v998, %v89
  %v1003 = vadd.f32 %v999, %v90
  %v1004 = vadd.f32 %v1000, %v91
  %v1005 = vadd.f32 %v1001, %v92
  %v1006 = vadd.f32 %v1002, %v93
  %v1007 = vadd.f32 %v1003, %v94
  %v1008 = vadd.f32 %v1004, %v95
  %v1009 = vadd.f32 %v1005, %v96
  %v1010 = vadd.f32 %v1006, %v97
  %v1011 = vadd.f32 %v1007, %v98
  %v1012 = vadd.f32 %v1008, %v99
  %v1013 = vadd.f32 %v1009, %v100
  %v1015 = vsel %vm240, %v997, 0
  %1017 = vmatpush.msra.mxu0 0.0
  %1018 = vmatpush.msra.mxu0 0.0
  %1019 = vmatpush.msra.mxu0 0.0
  %1020 = vmatpush.msra.mxu0 0.0
  %1021 = vmatpush.msra.mxu0 0.0
  %1022 = vmatpush.msra.mxu0 0.0
  %1023 = vmatpush.msra.mxu0 0.0
  %1024 = vmatpush.msra.mxu0 0.0
  %1025 = vmatpush.msra.mxu0 0.0
  %1026 = vmatpush.msra.mxu0 0.0
  %1027 = vmatpush.msra.mxu0 0.0
  %1028 = vmatpush.msra.mxu0 0.0
  %1029 = vmatpush.msra.mxu0 %v1013
  %1030 = vmatpush.msra.mxu0 %v1012
  %1031 = vmatpush.msra.mxu0 %v1011
  %1032 = vmatpush.msra.mxu0 %v1010
  %1033 = vmatmul.f32.gmra.mxu0 %v1015
  %v1034 = vpop.f32.mrf.mxu0
  %v1035 = vadd.f32 0.0, %v1034
  %1036 = vdwg.mxu0
  %v1037 = vsub.f32 %v25, %v1035
  %v1038 = vmul.f32 %v888, %v996
  %v1039 = vmul.f32 %v889, %v996
  %v1040 = vmul.f32 %v890, %v996
  %v1041 = vmul.f32 %v891, %v996
  %v1042 = vmul.f32 %v892, %v996
  %v1043 = vmul.f32 %v893, %v996
  %v1044 = vmul.f32 %v894, %v996
  %v1045 = vmul.f32 %v895, %v996
  %v1046 = vmul.f32 %v896, %v996
  %v1047 = vmul.f32 %v897, %v996
  %v1048 = vmul.f32 %v898, %v996
  %v1049 = vmul.f32 %v899, %v996
  %v1061 = vrot.slane %v1038, 4
  %v1062 = vrot.slane %v1039, 4
  %v1063 = vsel %vm578, %v1061, %v1062
  %v1064 = vrot.slane %v1040, 4
  %v1065 = vsel %vm578, %v1062, %v1064
  %v1066 = vrot.slane %v1041, 4
  %v1067 = vsel %vm578, %v1064, %v1066
  %v1068 = vrot.slane %v1042, 4
  %v1069 = vsel %vm578, %v1066, %v1068
  %v1070 = vrot.slane %v1043, 4
  %v1071 = vsel %vm578, %v1068, %v1070
  %v1072 = vrot.slane %v1044, 4
  %v1073 = vsel %vm578, %v1070, %v1072
  %v1074 = vrot.slane %v1045, 4
  %v1075 = vsel %vm578, %v1072, %v1074
  %v1076 = vrot.slane %v1046, 4
  %v1077 = vsel %vm578, %v1074, %v1076
  %v1078 = vrot.slane %v1047, 4
  %v1079 = vsel %vm578, %v1076, %v1078
  %v1080 = vrot.slane %v1048, 4
  %v1081 = vsel %vm578, %v1078, %v1080
  %v1082 = vsel %vm240, %v1063, 0
  %v1084 = vsel %vm240, %v1065, 0
  %v1086 = vsel %vm240, %v1067, 0
  %v1088 = vsel %vm240, %v1069, 0
  %v1090 = vsel %vm240, %v1071, 0
  %v1092 = vsel %vm240, %v1073, 0
  %v1094 = vsel %vm240, %v1075, 0
  %v1096 = vsel %vm240, %v1077, 0
  %v1098 = vsel %vm240, %v1079, 0
  %v1100 = vsel %vm240, %v1081, 0
  %1102 = vmatpush.msra.mxu0 0.0
  %1103 = vmatpush.msra.mxu0 0.0
  %1104 = vmatpush.msra.mxu0 0.0
  %1105 = vmatpush.msra.mxu0 0.0
  %1106 = vmatpush.msra.mxu0 0.0
  %1107 = vmatpush.msra.mxu0 0.0
  %1108 = vmatpush.msra.mxu0 0.0
  %1109 = vmatpush.msra.mxu0 0.0
  %1110 = vmatpush.msra.mxu0 0.0
  %1111 = vmatpush.msra.mxu0 0.0
  %1112 = vmatpush.msra.mxu0 0.0
  %1113 = vmatpush.msra.mxu0 0.0
  %1114 = vmatpush.msra.mxu0 %v88
  %1115 = vmatpush.msra.mxu0 %v87
  %1116 = vmatpush.msra.mxu0 %v86
  %1117 = vmatpush.msra.mxu0 %v85
  %1118 = vmatmul.f32.gmra.mxu0 %v1082
  %v1119 = vpop.f32.mrf.mxu0
  %v1120 = vadd.f32 0.0, %v1119
  %1121 = vmatmul.f32.gmra.mxu0 %v1084
  %v1122 = vpop.f32.mrf.mxu0
  %v1123 = vadd.f32 0.0, %v1122
  %1124 = vmatmul.f32.gmra.mxu0 %v1086
  %v1125 = vpop.f32.mrf.mxu0
  %v1126 = vadd.f32 0.0, %v1125
  %1127 = vmatmul.f32.gmra.mxu0 %v1088
  %v1128 = vpop.f32.mrf.mxu0
  %v1129 = vadd.f32 0.0, %v1128
  %1130 = vmatmul.f32.gmra.mxu0 %v1090
  %v1131 = vpop.f32.mrf.mxu0
  %v1132 = vadd.f32 0.0, %v1131
  %1133 = vmatmul.f32.gmra.mxu0 %v1092
  %v1134 = vpop.f32.mrf.mxu0
  %v1135 = vadd.f32 0.0, %v1134
  %1136 = vmatmul.f32.gmra.mxu0 %v1094
  %v1137 = vpop.f32.mrf.mxu0
  %v1138 = vadd.f32 0.0, %v1137
  %1139 = vmatmul.f32.gmra.mxu0 %v1096
  %v1140 = vpop.f32.mrf.mxu0
  %v1141 = vadd.f32 0.0, %v1140
  %1142 = vmatmul.f32.gmra.mxu0 %v1098
  %v1143 = vpop.f32.mrf.mxu0
  %v1144 = vadd.f32 0.0, %v1143
  %1145 = vmatmul.f32.gmra.mxu0 %v1100
  %v1146 = vpop.f32.mrf.mxu0
  %v1147 = vadd.f32 0.0, %v1146
  %1148 = vdwg.mxu0
  %v1149 = vsel %vm240, %v1038, 0
  %v1151 = vsel %vm240, %v1039, 0
  %v1153 = vsel %vm240, %v1040, 0
  %v1155 = vsel %vm240, %v1041, 0
  %v1157 = vsel %vm240, %v1042, 0
  %v1159 = vsel %vm240, %v1043, 0
  %v1161 = vsel %vm240, %v1044, 0
  %v1163 = vsel %vm240, %v1045, 0
  %v1165 = vsel %vm240, %v1046, 0
  %v1167 = vsel %vm240, %v1047, 0
  %1169 = vmatpush.msra.mxu0 0.0
  %1170 = vmatpush.msra.mxu0 0.0
  %1171 = vmatpush.msra.mxu0 0.0
  %1172 = vmatpush.msra.mxu0 0.0
  %1173 = vmatpush.msra.mxu0 0.0
  %1174 = vmatpush.msra.mxu0 0.0
  %1175 = vmatpush.msra.mxu0 0.0
  %1176 = vmatpush.msra.mxu0 0.0
  %1177 = vmatpush.msra.mxu0 0.0
  %1178 = vmatpush.msra.mxu0 0.0
  %1179 = vmatpush.msra.mxu0 0.0
  %1180 = vmatpush.msra.mxu0 0.0
  %1181 = vmatpush.msra.mxu0 %v84
  %1182 = vmatpush.msra.mxu0 %v83
  %1183 = vmatpush.msra.mxu0 %v82
  %1184 = vmatpush.msra.mxu0 %v81
  %1185 = vmatmul.f32.gmra.mxu0 %v1149
  %v1186 = vpop.f32.mrf.mxu0
  %v1187 = vadd.f32 %v1120, %v1186
  %1188 = vmatmul.f32.gmra.mxu0 %v1151
  %v1189 = vpop.f32.mrf.mxu0
  %v1190 = vadd.f32 %v1123, %v1189
  %1191 = vmatmul.f32.gmra.mxu0 %v1153
  %v1192 = vpop.f32.mrf.mxu0
  %v1193 = vadd.f32 %v1126, %v1192
  %1194 = vmatmul.f32.gmra.mxu0 %v1155
  %v1195 = vpop.f32.mrf.mxu0
  %v1196 = vadd.f32 %v1129, %v1195
  %1197 = vmatmul.f32.gmra.mxu0 %v1157
  %v1198 = vpop.f32.mrf.mxu0
  %v1199 = vadd.f32 %v1132, %v1198
  %1200 = vmatmul.f32.gmra.mxu0 %v1159
  %v1201 = vpop.f32.mrf.mxu0
  %v1202 = vadd.f32 %v1135, %v1201
  %1203 = vmatmul.f32.gmra.mxu0 %v1161
  %v1204 = vpop.f32.mrf.mxu0
  %v1205 = vadd.f32 %v1138, %v1204
  %1206 = vmatmul.f32.gmra.mxu0 %v1163
  %v1207 = vpop.f32.mrf.mxu0
  %v1208 = vadd.f32 %v1141, %v1207
  %1209 = vmatmul.f32.gmra.mxu0 %v1165
  %v1210 = vpop.f32.mrf.mxu0
  %v1211 = vadd.f32 %v1144, %v1210
  %1212 = vmatmul.f32.gmra.mxu0 %v1167
  %v1213 = vpop.f32.mrf.mxu0
  %v1214 = vadd.f32 %v1147, %v1213
  %1215 = vdwg.mxu0
  %v1216 = vsel %vm240, %v1048, 0
  %1218 = vmatpush.msra.mxu0 0.0
  %1219 = vmatpush.msra.mxu0 0.0
  %1220 = vmatpush.msra.mxu0 0.0
  %1221 = vmatpush.msra.mxu0 0.0
  %1222 = vmatpush.msra.mxu0 0.0
  %1223 = vmatpush.msra.mxu0 0.0
  %1224 = vmatpush.msra.mxu0 0.0
  %1225 = vmatpush.msra.mxu0 0.0
  %1226 = vmatpush.msra.mxu0 0.0
  %1227 = vmatpush.msra.mxu0 0.0
  %1228 = vmatpush.msra.mxu0 0.0
  %1229 = vmatpush.msra.mxu0 0.0
  %1230 = vmatpush.msra.mxu0 %v92
  %1231 = vmatpush.msra.mxu0 %v91
  %1232 = vmatpush.msra.mxu0 %v90
  %1233 = vmatpush.msra.mxu0 %v89
  %1234 = vmatmul.f32.gmra.mxu0 %v1151
  %v1235 = vpop.f32.mrf.mxu0
  %v1236 = vadd.f32 0.0, %v1235
  %1237 = vmatmul.f32.gmra.mxu0 %v1153
  %v1238 = vpop.f32.mrf.mxu0
  %v1239 = vadd.f32 0.0, %v1238
  %1240 = vmatmul.f32.gmra.mxu0 %v1155
  %v1241 = vpop.f32.mrf.mxu0
  %v1242 = vadd.f32 0.0, %v1241
  %1243 = vmatmul.f32.gmra.mxu0 %v1157
  %v1244 = vpop.f32.mrf.mxu0
  %v1245 = vadd.f32 0.0, %v1244
  %1246 = vmatmul.f32.gmra.mxu0 %v1159
  %v1247 = vpop.f32.mrf.mxu0
  %v1248 = vadd.f32 0.0, %v1247
  %1249 = vmatmul.f32.gmra.mxu0 %v1161
  %v1250 = vpop.f32.mrf.mxu0
  %v1251 = vadd.f32 0.0, %v1250
  %1252 = vmatmul.f32.gmra.mxu0 %v1163
  %v1253 = vpop.f32.mrf.mxu0
  %v1254 = vadd.f32 0.0, %v1253
  %1255 = vmatmul.f32.gmra.mxu0 %v1165
  %v1256 = vpop.f32.mrf.mxu0
  %v1257 = vadd.f32 0.0, %v1256
  %1258 = vmatmul.f32.gmra.mxu0 %v1167
  %v1259 = vpop.f32.mrf.mxu0
  %v1260 = vadd.f32 0.0, %v1259
  %1261 = vmatmul.f32.gmra.mxu0 %v1216
  %v1262 = vpop.f32.mrf.mxu0
  %v1263 = vadd.f32 0.0, %v1262
  %1264 = vdwg.mxu0
  %v1265 = vadd.f32 %v1187, %v1236
  %v1266 = vadd.f32 %v1190, %v1239
  %v1267 = vadd.f32 %v1193, %v1242
  %v1268 = vadd.f32 %v1196, %v1245
  %v1269 = vadd.f32 %v1199, %v1248
  %v1270 = vadd.f32 %v1202, %v1251
  %v1271 = vadd.f32 %v1205, %v1254
  %v1272 = vadd.f32 %v1208, %v1257
  %v1273 = vadd.f32 %v1211, %v1260
  %v1274 = vadd.f32 %v1214, %v1263
  %v1276 = vrot.slane %v1049, 4
  %v1277 = vsel %vm578, %v1080, %v1276
  %v1278 = vsel %vm240, %v1277, 0
  %1280 = vmatpush.msra.mxu0 0.0
  %1281 = vmatpush.msra.mxu0 0.0
  %1282 = vmatpush.msra.mxu0 0.0
  %1283 = vmatpush.msra.mxu0 0.0
  %1284 = vmatpush.msra.mxu0 0.0
  %1285 = vmatpush.msra.mxu0 0.0
  %1286 = vmatpush.msra.mxu0 0.0
  %1287 = vmatpush.msra.mxu0 0.0
  %1288 = vmatpush.msra.mxu0 0.0
  %1289 = vmatpush.msra.mxu0 0.0
  %1290 = vmatpush.msra.mxu0 0.0
  %1291 = vmatpush.msra.mxu0 0.0
  %1292 = vmatpush.msra.mxu0 %v96
  %1293 = vmatpush.msra.mxu0 %v95
  %1294 = vmatpush.msra.mxu0 %v94
  %1295 = vmatpush.msra.mxu0 %v93
  %1296 = vmatmul.f32.gmra.mxu0 %v1084
  %v1297 = vpop.f32.mrf.mxu0
  %v1298 = vadd.f32 0.0, %v1297
  %1299 = vmatmul.f32.gmra.mxu0 %v1086
  %v1300 = vpop.f32.mrf.mxu0
  %v1301 = vadd.f32 0.0, %v1300
  %1302 = vmatmul.f32.gmra.mxu0 %v1088
  %v1303 = vpop.f32.mrf.mxu0
  %v1304 = vadd.f32 0.0, %v1303
  %1305 = vmatmul.f32.gmra.mxu0 %v1090
  %v1306 = vpop.f32.mrf.mxu0
  %v1307 = vadd.f32 0.0, %v1306
  %1308 = vmatmul.f32.gmra.mxu0 %v1092
  %v1309 = vpop.f32.mrf.mxu0
  %v1310 = vadd.f32 0.0, %v1309
  %1311 = vmatmul.f32.gmra.mxu0 %v1094
  %v1312 = vpop.f32.mrf.mxu0
  %v1313 = vadd.f32 0.0, %v1312
  %1314 = vmatmul.f32.gmra.mxu0 %v1096
  %v1315 = vpop.f32.mrf.mxu0
  %v1316 = vadd.f32 0.0, %v1315
  %1317 = vmatmul.f32.gmra.mxu0 %v1098
  %v1318 = vpop.f32.mrf.mxu0
  %v1319 = vadd.f32 0.0, %v1318
  %1320 = vmatmul.f32.gmra.mxu0 %v1100
  %v1321 = vpop.f32.mrf.mxu0
  %v1322 = vadd.f32 0.0, %v1321
  %1323 = vmatmul.f32.gmra.mxu0 %v1278
  %v1324 = vpop.f32.mrf.mxu0
  %v1325 = vadd.f32 0.0, %v1324
  %1326 = vdwg.mxu0
  %v1327 = vadd.f32 %v1265, %v1298
  %v1328 = vadd.f32 %v1266, %v1301
  %v1329 = vadd.f32 %v1267, %v1304
  %v1330 = vadd.f32 %v1268, %v1307
  %v1331 = vadd.f32 %v1269, %v1310
  %v1332 = vadd.f32 %v1270, %v1313
  %v1333 = vadd.f32 %v1271, %v1316
  %v1334 = vadd.f32 %v1272, %v1319
  %v1335 = vadd.f32 %v1273, %v1322
  %v1336 = vadd.f32 %v1274, %v1325
  %v1337 = vsel %vm240, %v1049, 0
  %1339 = vmatpush.msra.mxu0 0.0
  %1340 = vmatpush.msra.mxu0 0.0
  %1341 = vmatpush.msra.mxu0 0.0
  %1342 = vmatpush.msra.mxu0 0.0
  %1343 = vmatpush.msra.mxu0 0.0
  %1344 = vmatpush.msra.mxu0 0.0
  %1345 = vmatpush.msra.mxu0 0.0
  %1346 = vmatpush.msra.mxu0 0.0
  %1347 = vmatpush.msra.mxu0 0.0
  %1348 = vmatpush.msra.mxu0 0.0
  %1349 = vmatpush.msra.mxu0 0.0
  %1350 = vmatpush.msra.mxu0 0.0
  %1351 = vmatpush.msra.mxu0 %v100
  %1352 = vmatpush.msra.mxu0 %v99
  %1353 = vmatpush.msra.mxu0 %v98
  %1354 = vmatpush.msra.mxu0 %v97
  %1355 = vmatmul.f32.gmra.mxu0 %v1153
  %v1356 = vpop.f32.mrf.mxu0
  %v1357 = vadd.f32 0.0, %v1356
  %1358 = vmatmul.f32.gmra.mxu0 %v1155
  %v1359 = vpop.f32.mrf.mxu0
  %v1360 = vadd.f32 0.0, %v1359
  %1361 = vmatmul.f32.gmra.mxu0 %v1157
  %v1362 = vpop.f32.mrf.mxu0
  %v1363 = vadd.f32 0.0, %v1362
  %1364 = vmatmul.f32.gmra.mxu0 %v1159
  %v1365 = vpop.f32.mrf.mxu0
  %v1366 = vadd.f32 0.0, %v1365
  %1367 = vmatmul.f32.gmra.mxu0 %v1161
  %v1368 = vpop.f32.mrf.mxu0
  %v1369 = vadd.f32 0.0, %v1368
  %1370 = vmatmul.f32.gmra.mxu0 %v1163
  %v1371 = vpop.f32.mrf.mxu0
  %v1372 = vadd.f32 0.0, %v1371
  %1373 = vmatmul.f32.gmra.mxu0 %v1165
  %v1374 = vpop.f32.mrf.mxu0
  %v1375 = vadd.f32 0.0, %v1374
  %1376 = vmatmul.f32.gmra.mxu0 %v1167
  %v1377 = vpop.f32.mrf.mxu0
  %v1378 = vadd.f32 0.0, %v1377
  %1379 = vmatmul.f32.gmra.mxu0 %v1216
  %v1380 = vpop.f32.mrf.mxu0
  %v1381 = vadd.f32 0.0, %v1380
  %1382 = vmatmul.f32.gmra.mxu0 %v1337
  %v1383 = vpop.f32.mrf.mxu0
  %v1384 = vadd.f32 0.0, %v1383
  %1385 = vdwg.mxu0
  %v1386 = vadd.f32 %v1327, %v1357
  %v1387 = vadd.f32 %v1328, %v1360
  %v1388 = vadd.f32 %v1329, %v1363
  %v1389 = vadd.f32 %v1330, %v1366
  %v1390 = vadd.f32 %v1331, %v1369
  %v1391 = vadd.f32 %v1332, %v1372
  %v1392 = vadd.f32 %v1333, %v1375
  %v1393 = vadd.f32 %v1334, %v1378
  %v1394 = vadd.f32 %v1335, %v1381
  %v1395 = vadd.f32 %v1336, %v1384
  %v1396 = vperm.slane %v1037, 0
  %v1397 = vadd.f32 %v1386, %v1396
  %v1398 = vadd.f32 %v1387, %v1396
  %v1399 = vadd.f32 %v1388, %v1396
  %v1400 = vadd.f32 %v1389, %v1396
  %v1401 = vadd.f32 %v1390, %v1396
  %v1402 = vadd.f32 %v1391, %v1396
  %v1403 = vadd.f32 %v1392, %v1396
  %v1404 = vadd.f32 %v1393, %v1396
  %v1405 = vadd.f32 %v1394, %v1396
  %v1406 = vadd.f32 %v1395, %v1396
  %v1407 = vmax.f32 %v1397, 0.0
  %v1408 = vmax.f32 %v1398, 0.0
  %v1409 = vmax.f32 %v1399, 0.0
  %v1410 = vmax.f32 %v1400, 0.0
  %v1411 = vmax.f32 %v1401, 0.0
  %v1412 = vmax.f32 %v1402, 0.0
  %v1413 = vmax.f32 %v1403, 0.0
  %v1414 = vmax.f32 %v1404, 0.0
  %v1415 = vmax.f32 %v1405, 0.0
  %v1416 = vmax.f32 %v1406, 0.0
  %v1417 = vmul.f32 %v1407, %v51
  %v1418 = vmul.f32 %v1408, %v52
  %v1419 = vmul.f32 %v1409, %v53
  %v1420 = vmul.f32 %v1410, %v54
  %v1421 = vmul.f32 %v1411, %v55
  %v1422 = vmul.f32 %v1412, %v56
  %v1423 = vmul.f32 %v1413, %v57
  %v1424 = vmul.f32 %v1414, %v58
  %v1425 = vmul.f32 %v1415, %v59
  %v1426 = vmul.f32 %v1416, %v60
  %v1427 = vsel %vm240, %v1417, 0.0
  %v1428 = vsel %vm240, %v1418, 0.0
  %v1429 = vadd.f32 %v1427, %v1428
  %v1430 = vsel %vm240, %v1419, 0.0
  %v1431 = vadd.f32 %v1429, %v1430
  %v1432 = vsel %vm240, %v1420, 0.0
  %v1433 = vadd.f32 %v1431, %v1432
  %v1434 = vsel %vm240, %v1421, 0.0
  %v1435 = vadd.f32 %v1433, %v1434
  %v1436 = vsel %vm240, %v1422, 0.0
  %v1437 = vadd.f32 %v1435, %v1436
  %v1438 = vsel %vm240, %v1423, 0.0
  %v1439 = vadd.f32 %v1437, %v1438
  %v1440 = vsel %vm240, %v1424, 0.0
  %v1441 = vadd.f32 %v1439, %v1440
  %v1442 = vsel %vm240, %v1425, 0.0
  %v1443 = vadd.f32 %v1441, %v1442
  %v1444 = vsel %vm240, %v1426, 0.0
  %v1445 = vadd.f32 %v1443, %v1444
  %v1446 = vrot.slane %v1445, 4
  %v1447 = vadd.f32 %v1445, %v1446
  %v1448 = vrot.slane %v1447, 2
  %v1449 = vadd.f32 %v1447, %v1448
  %v1450 = vrot.slane %v1449, 1
  %v1451 = vadd.f32 %v1449, %v1450
  %v1452 = vmul.f32 %v1451, 0.035714287
  %v1453 = vmul.f32 %v1417, %v1407
  %v1454 = vmul.f32 %v1418, %v1408
  %v1455 = vmul.f32 %v1419, %v1409
  %v1456 = vmul.f32 %v1420, %v1410
  %v1457 = vmul.f32 %v1421, %v1411
  %v1458 = vmul.f32 %v1422, %v1412
  %v1459 = vmul.f32 %v1423, %v1413
  %v1460 = vmul.f32 %v1424, %v1414
  %v1461 = vmul.f32 %v1425, %v1415
  %v1462 = vmul.f32 %v1426, %v1416
  %v1463 = vsel %vm240, %v1453, 0.0
  %v1464 = vsel %vm240, %v1454, 0.0
  %v1465 = vadd.f32 %v1463, %v1464
  %v1466 = vsel %vm240, %v1455, 0.0
  %v1467 = vadd.f32 %v1465, %v1466
  %v1468 = vsel %vm240, %v1456, 0.0
  %v1469 = vadd.f32 %v1467, %v1468
  %v1470 = vsel %vm240, %v1457, 0.0
  %v1471 = vadd.f32 %v1469, %v1470
  %v1472 = vsel %vm240, %v1458, 0.0
  %v1473 = vadd.f32 %v1471, %v1472
  %v1474 = vsel %vm240, %v1459, 0.0
  %v1475 = vadd.f32 %v1473, %v1474
  %v1476 = vsel %vm240, %v1460, 0.0
  %v1477 = vadd.f32 %v1475, %v1476
  %v1478 = vsel %vm240, %v1461, 0.0
  %v1479 = vadd.f32 %v1477, %v1478
  %v1480 = vsel %vm240, %v1462, 0.0
  %v1481 = vadd.f32 %v1479, %v1480
  %v1482 = vrot.slane %v1481, 4
  %v1483 = vadd.f32 %v1481, %v1482
  %v1484 = vrot.slane %v1483, 2
  %v1485 = vadd.f32 %v1483, %v1484
  %v1486 = vrot.slane %v1485, 1
  %v1487 = vadd.f32 %v1485, %v1486
  %v1488 = vmul.f32 %v1487, 0.035714287
  %v1489 = vmul.f32 %v1452, %v1452
  %v1490 = vsub.f32 %v1488, %v1489
  %v1491 = vadd.f32 %v1490, 1e-05
  %v1492 = vrsqrt.pop %v1491
  %v1493 = vmul.f32 %v1492, %v1491
  %v1494 = vmul.f32 %v1493, %v1492
  %v1495 = vmul.f32 0.5, %v1494
  %v1496 = vsub.f32 1.5, %v1495
  %v1497 = vmul.f32 %v1492, %v1496
  %vm1498 = vweird.f32 %v1491
  %vm1499 = vweird.f32 %v1492
  %vm1500 = vmor %vm1498, %vm1499
  %v1501 = vsel %vm1500, %v1492, %v1497
  %v1502 = vld [vmem:[%s3] sm:$0xff]
  %v1503 = vld [vmem:[%s3 + $0x8] sm:$0xff]
  %v1504 = vld [vmem:[%s3 + $0x10] sm:$0xff]
  %v1505 = vld [vmem:[%s3 + $0x18] sm:$0xff]
  %v1506 = vld [vmem:[%s4] sm:$0x1]
  %v1507 = vmul.f32 %v1452, %v1501
  %v1509 = vsel %vm240, %v1507, 0
  %1511 = vmatpush.msra.mxu0 0.0
  %1512 = vmatpush.msra.mxu0 0.0
  %1513 = vmatpush.msra.mxu0 0.0
  %1514 = vmatpush.msra.mxu0 0.0
  %1515 = vmatpush.msra.mxu0 0.0
  %1516 = vmatpush.msra.mxu0 0.0
  %1517 = vmatpush.msra.mxu0 0.0
  %1518 = vmatpush.msra.mxu0 0.0
  %1519 = vmatpush.msra.mxu0 0.0
  %1520 = vmatpush.msra.mxu0 0.0
  %1521 = vmatpush.msra.mxu0 0.0
  %1522 = vmatpush.msra.mxu0 0.0
  %1523 = vmatpush.msra.mxu0 %v1505
  %1524 = vmatpush.msra.mxu0 %v1504
  %1525 = vmatpush.msra.mxu0 %v1503
  %1526 = vmatpush.msra.mxu0 %v1502
  %1527 = vmatmul.f32.gmra.mxu0 %v1509
  %v1528 = vpop.f32.mrf.mxu0
  %v1529 = vadd.f32 0.0, %v1528
  %1530 = vdwg.mxu0
  %v1531 = vsub.f32 %v1506, %v1529
  %v1532 = vmul.f32 %v1407, %v1501
  %v1533 = vmul.f32 %v1408, %v1501
  %v1534 = vmul.f32 %v1409, %v1501
  %v1535 = vmul.f32 %v1410, %v1501
  %v1536 = vmul.f32 %v1411, %v1501
  %v1537 = vmul.f32 %v1412, %v1501
  %v1538 = vmul.f32 %v1413, %v1501
  %v1539 = vmul.f32 %v1414, %v1501
  %v1540 = vmul.f32 %v1415, %v1501
  %v1541 = vmul.f32 %v1416, %v1501
  %v1543 = vperm.slane %v1531, 0
  %v1546 = vsel %vm240, %v1532, 0
  %v1549 = vsel %vm240, %v1533, 0
  %v1552 = vsel %vm240, %v1534, 0
  %v1555 = vsel %vm240, %v1535, 0
  %v1558 = vsel %vm240, %v1536, 0
  %v1561 = vsel %vm240, %v1537, 0
  %v1564 = vsel %vm240, %v1538, 0
  %v1567 = vsel %vm240, %v1539, 0
  %v1570 = vsel %vm240, %v1540, 0
  %v1573 = vsel %vm240, %v1541, 0
  %1575 = vmatpush.msra.mxu0 0.0
  %1576 = vmatpush.msra.mxu0 0.0
  %1577 = vmatpush.msra.mxu0 0.0
  %1578 = vmatpush.msra.mxu0 0.0
  %1579 = vmatpush.msra.mxu0 0.0
  %1580 = vmatpush.msra.mxu0 0.0
  %1581 = vmatpush.msra.mxu0 0.0
  %1582 = vmatpush.msra.mxu0 0.0
  %1583 = vmatpush.msra.mxu0 0.0
  %1584 = vmatpush.msra.mxu0 0.0
  %1585 = vmatpush.msra.mxu0 0.0
  %1586 = vmatpush.msra.mxu0 0.0
  %1587 = vmatpush.msra.mxu0 %v1505
  %1588 = vmatpush.msra.mxu0 %v1504
  %1589 = vmatpush.msra.mxu0 %v1503
  %1590 = vmatpush.msra.mxu0 %v1502
  %1591 = vmatmul.f32.gmra.mxu0 %v1546
  %v1592 = vpop.f32.mrf.mxu0
  %v1593 = vadd.f32 %v1543, %v1592
  %1594 = vmatmul.f32.gmra.mxu0 %v1549
  %v1595 = vpop.f32.mrf.mxu0
  %v1596 = vadd.f32 %v1543, %v1595
  %1597 = vmatmul.f32.gmra.mxu0 %v1552
  %v1598 = vpop.f32.mrf.mxu0
  %v1599 = vadd.f32 %v1543, %v1598
  %1600 = vmatmul.f32.gmra.mxu0 %v1555
  %v1601 = vpop.f32.mrf.mxu0
  %v1602 = vadd.f32 %v1543, %v1601
  %1603 = vmatmul.f32.gmra.mxu0 %v1558
  %v1604 = vpop.f32.mrf.mxu0
  %v1605 = vadd.f32 %v1543, %v1604
  %1606 = vmatmul.f32.gmra.mxu0 %v1561
  %v1607 = vpop.f32.mrf.mxu0
  %v1608 = vadd.f32 %v1543, %v1607
  %1609 = vmatmul.f32.gmra.mxu0 %v1564
  %v1610 = vpop.f32.mrf.mxu0
  %v1611 = vadd.f32 %v1543, %v1610
  %1612 = vmatmul.f32.gmra.mxu0 %v1567
  %v1613 = vpop.f32.mrf.mxu0
  %v1614 = vadd.f32 %v1543, %v1613
  %1615 = vmatmul.f32.gmra.mxu0 %v1570
  %v1616 = vpop.f32.mrf.mxu0
  %v1617 = vadd.f32 %v1543, %v1616
  %1618 = vmatmul.f32.gmra.mxu0 %v1573
  %v1619 = vpop.f32.mrf.mxu0
  %v1620 = vadd.f32 %v1543, %v1619
  %1621 = vdwg.mxu0
  %1622 = vst [vmem:[%s6] sm:$0xff] %v1593
  %1623 = vst [vmem:[%s6 + $0x8] sm:$0xff] %v1596
  %1624 = vst [vmem:[%s6 + $0x10] sm:$0xff] %v1599
  %1625 = vst [vmem:[%s6 + $0x18] sm:$0xff] %v1602
  %1626 = vst [vmem:[%s6 + $0x20] sm:$0xff] %v1605
  %1627 = vst [vmem:[%s6 + $0x28] sm:$0xff] %v1608
  %1628 = vst [vmem:[%s6 + $0x30] sm:$0xff] %v1611
  %1629 = vst [vmem:[%s6 + $0x38] sm:$0xff] %v1614
  %1630 = vst [vmem:[%s6 + $0x40] sm:$0xff] %v1617
  %1631 = vst [vmem:[%s6 + $0x48] sm:$0xff] %v1620
  // Predicated region
  $region26: #{tdnn_forward.1} parent=0 // pred_check
    _
  $region27: #{tdnn_forward.1} parent=0 // pred_check_branch
    %1633 = sbr.rel (0) target = $region29
  $region28: #{tdnn_forward.1} parent=0 // pred_region
    _
  $region29: #{tdnn_forward.1} parent=0 // pred_fallthru
    _
  // Predicated region
  $region30: #{tdnn_forward.1} parent=0 // pred_check
    _
  $region31: #{tdnn_forward.1} parent=0 // pred_check_branch
    %1635 = sbr.rel (0) target = $region33
  $region32: #{tdnn_forward.1} parent=0 // pred_region
    _
  $region33: #{tdnn_forward.1} parent=0 // pred_fallthru
    _

</llo_original>
